<compile_context>
chip_gen: v7x
topology: tpu7x:2x2x1
jax: 0.10.0
libtpu: 0.0.40
codegen_flags: <defaults>
</compile_context>

<pallas_src>
import functools

import jax
import jax.numpy as jnp
from jax.experimental import pallas as pl
from jax.experimental.pallas import tpu as pltpu

F32 = jnp.float32


# ---------------------------------------------------------------------------
# Fused kernel: embeddings -> (energy TCN || weather TCN) -> gate -> head
# ---------------------------------------------------------------------------
def _t2snt_kernel(T, L, K,
                  x_ref, tidx_ref, sel_ref,
                  w1p_ref, w2p_ref, b2p_ref,
                  tw_ref, tb_ref,
                  wz_ref, bz_ref, wh1_ref, bh1_ref,
                  wout_ref, bout_ref,
                  o_ref):
    """Single-invocation forward for the whole model.

    x_ref    : (B*T, 32)  packed [time | energy | weather | const-1] channels
    tidx_ref : (B*T, 2D)  int32 per-row time index (hoisted causal index)
    sel_ref  : (B, B*T)   f32 one-hot rows selecting timestep T-1 per batch
    tw_ref   : (2L, K*2D, 2D) stacked per-level conv1/conv2 tap weights
    """
    D2 = w2p_ref.shape[1]          # 2 * emb  (energy | weather streams)
    D = D2 // 2
    t_idx = tidx_ref[...]          # hoisted: drives every causal mask below

    masks = {}                     # one mask per distinct shift, built once

    def causal_mask(s):
        if s not in masks:
            masks[s] = jnp.where(t_idx >= s, 1.0, 0.0)
        return masks[s]

    def shifted(v, s):
        """v delayed by s timesteps (causal left zero-pad); batch-safe."""
        if s == 0:
            return v
        if s >= T:
            return jnp.zeros_like(v)             # tap only sees the zero pad
        return causal_mask(s) * pltpu.roll(v, shift=s, axis=0)

    # Embeddings: block-diagonal W1 over the packed inputs (bias folded via
    # the constant-1 lane), then a second matmul that also folds in
    # "+ time_emb" and emits the stacked stream layout
    #   [energy_emb + time_emb | weather_emb + time_emb]   -> (B*T, 2D).
    h1 = jnp.maximum(
        jnp.dot(x_ref[...], w1p_ref[...], preferred_element_type=F32), 0.0)
    h = jnp.dot(h1, w2p_ref[...], preferred_element_type=F32) + b2p_ref[...]

    # Both TCNs at once (streams block-diagonal on the output lanes).  Per
    # dilated causal conv, the K taps are lane-concatenated -> single matmul
    # with a K*2D contraction instead of K small ones.
    for lvl in range(L):
        dil = 2 ** lvl
        res = h
        xcat = jnp.concatenate(
            [shifted(h, (K - 1 - j) * dil) for j in range(K)], axis=-1)
        c1 = jnp.maximum(
            jnp.dot(xcat, tw_ref[2 * lvl], preferred_element_type=F32)
            + tb_ref[2 * lvl], 0.0)
        xcat = jnp.concatenate(
            [shifted(c1, (K - 1 - j) * dil) for j in range(K)], axis=-1)
        c2 = jnp.maximum(
            jnp.dot(xcat, tw_ref[2 * lvl + 1], preferred_element_type=F32)
            + tb_ref[2 * lvl + 1], 0.0)
        h = jnp.maximum(c2 + res, 0.0)        # downsample is None (D == D)

    # Only timestep T-1 reaches the output head: gather those B rows with a
    # tiny selection matmul.
    h_last = jnp.dot(sel_ref[...], h, preferred_element_type=F32)   # (B, 2D)
    hs = h_last[:, :D]                  # energy TCN output
    ht = h_last[:, D:]                  # weather TCN output

    # Gated fusion: XS + XT folded into one matmul over the stacked streams.
    z = jax.nn.sigmoid(
        jnp.dot(h_last, wz_ref[...], preferred_element_type=F32) + bz_ref[...])
    hg = ht + z * (hs - ht)             # == z*hs + (1-z)*ht
    u = jnp.maximum(
        jnp.dot(hg, wh1_ref[...], preferred_element_type=F32) + bh1_ref[...], 0.0)

    # Tail (FC_h conv2 -> output Conv1d(D,D,1) -> Conv1d(D,1,1)) pre-folded
    # into a single (1, D) projection row + scalar bias at pack time.
    o_ref[...] = (jnp.sum(u * wout_ref[...], axis=-1, keepdims=True)
                  + bout_ref[...])


_VMEM = pl.BlockSpec(memory_space=pltpu.MemorySpace.VMEM)


# ---------------------------------------------------------------------------
# Host-side packing + forward wrapper (single pallas_call, no grid)
# ---------------------------------------------------------------------------
def _pad8(c):
    return max(8, ((c + 7) // 8) * 8)


def _pack_inputs(time_input, energy_input, weather_input):
    """Pad each input's channels to 8, pack [time|energy|weather|const1] -> (B*T, 32)."""
    def pad_c(v):
        c = v.shape[-1]
        return jnp.pad(v.astype(F32), ((0, 0), (0, 0), (0, _pad8(c) - c)))
    B, T = energy_input.shape[:2]
    const = jnp.zeros((B, T, 8), F32).at[..., 0].set(1.0)   # bias lane
    xp = jnp.concatenate(
        [pad_c(time_input), pad_c(energy_input), pad_c(weather_input), const],
        axis=-1)
    return xp.reshape(B * T, xp.shape[-1])


@jax.jit
def t2snt_forward(pp, energy_input, weather_input, time_input):
    """Forward pass; pp = pack_params(init_params(...)).  Returns (B, 1)."""
    B, T, _ = energy_input.shape
    BT = B * T
    D2 = pp["W2p"].shape[1]
    L = pp["tW"].shape[0] // 2
    K = pp["tW"].shape[1] // D2

    x = _pack_inputs(time_input, energy_input, weather_input)      # (BT, 32)
    t_idx = jnp.broadcast_to(
        jnp.tile(jnp.arange(T, dtype=jnp.int32), B)[:, None], (BT, D2))
    sel = (jnp.arange(BT)[None, :]
           == (jnp.arange(B) * T + T - 1)[:, None]).astype(F32)    # (B, BT)

    args = (x, t_idx, sel,
            pp["W1p"], pp["W2p"], pp["b2p"],
            pp["tW"], pp["tb"],
            pp["Wz"], pp["bz"], pp["Wh1"], pp["bh1"],
            pp["Wout"], pp["bout"])
    return pl.pallas_call(
        functools.partial(_t2snt_kernel, T, L, K),
        out_shape=jax.ShapeDtypeStruct((B, 1), F32),
        in_specs=[_VMEM] * len(args),
        out_specs=_VMEM,
    )(*args)


# ---------------------------------------------------------------------------
# Parameters: deterministic synthetic init + one-time packing into the fused
# kernel's layout.
# ---------------------------------------------------------------------------
def init_params(key, energy_in, weather_in, time_in, emb, num_levels=3, ksize=3):
    keys = iter(jax.random.split(key, 64))
    nrm = lambda shape, s=0.05: s * jax.random.normal(next(keys), shape, dtype=F32)

    def in_w(cin):
        # real weight has cin rows; extra zero rows pair with zero-padded input lanes
        w = nrm((cin, emb))
        return jnp.pad(w, ((0, _pad8(cin) - cin), (0, 0)))

    p = {}
    # spatio-temporal (time) embedding: Conv1d-ReLU-Conv1d
    p["time_W1"], p["time_b1"] = in_w(time_in), nrm((1, emb))
    p["time_W2"], p["time_b2"] = nrm((emb, emb)), nrm((1, emb))
    # conv_1 (energy) and conv_2 (weather, weather_in - 1 channels)
    p["en_W1"], p["en_b1"] = in_w(energy_in), nrm((1, emb))
    p["en_W2"], p["en_b2"] = nrm((emb, emb)), nrm((1, emb))
    p["we_W1"], p["we_b1"] = in_w(weather_in - 1), nrm((1, emb))
    p["we_W2"], p["we_b2"] = nrm((emb, emb)), nrm((1, emb))
    # two TCNs, each: 3 TemporalBlocks x 2 dilated convs (effective weight-normed W)
    for name in ("etcn", "wtcn"):
        p[name + "_W1"] = nrm((num_levels, ksize, emb, emb), 0.01)
        p[name + "_b1"] = nrm((num_levels, 1, emb))
        p[name + "_W2"] = nrm((num_levels, ksize, emb, emb), 0.01)
        p[name + "_b2"] = nrm((num_levels, 1, emb))
    # gated fusion
    for name in ("gxs", "gxt", "gh1", "gh2"):
        p[name + "_W"] = nrm((emb, emb))
        p[name + "_b"] = nrm((1, emb))
    # output layer: Conv1d(D,D,1), Conv1d(D,1,1)
    p["out_W1"], p["out_b1"] = nrm((emb, emb)), nrm((1, emb))
    p["out_W2"], p["out_b2"] = nrm((1, emb)), nrm((1, 1))
    return p


def pack_params(p):
    """Fold the per-module weights into the fused-kernel layout (done once)."""
    D = p["time_W2"].shape[0]
    D2, D3 = 2 * D, 3 * D
    L, K = p["etcn_W1"].shape[0], p["etcn_W1"].shape[1]

    def blkdiag(mats):
        rows = sum(m.shape[0] for m in mats)
        cols = sum(m.shape[1] for m in mats)
        out = jnp.zeros((rows, cols), F32)
        r = c = 0
        for m in mats:
            out = out.at[r:r + m.shape[0], c:c + m.shape[1]].set(m)
            r += m.shape[0]
            c += m.shape[1]
        return out

    pp = {}
    # Embedding conv 1: block-diagonal over packed [time | energy | weather],
    # with the bias folded in as the row matching the constant-1 input lane.
    blk = blkdiag([p["time_W1"], p["en_W1"], p["we_W1"]])                 # (24, 3D)
    b1p = jnp.concatenate([p["time_b1"], p["en_b1"], p["we_b1"]], -1)     # (1, 3D)
    pp["W1p"] = jnp.concatenate([blk, b1p, jnp.zeros((7, D3), F32)], 0)   # (32, 3D)
    # Embedding conv 2, fused with "+ time_emb" and the stream stacking:
    #   out[:, 0:D] = energy_emb + time_emb, out[:, D:2D] = weather_emb + time_emb
    w2p = jnp.zeros((D3, D2), F32)
    w2p = w2p.at[0:D, 0:D].set(p["time_W2"])
    w2p = w2p.at[0:D, D:D2].set(p["time_W2"])
    w2p = w2p.at[D:D2, 0:D].set(p["en_W2"])
    w2p = w2p.at[D2:D3, D:D2].set(p["we_W2"])
    pp["W2p"] = w2p
    pp["b2p"] = jnp.concatenate([p["en_b2"] + p["time_b2"],
                                 p["we_b2"] + p["time_b2"]], -1)          # (1, 2D)

    # TCNs: per level/conv, stack the K taps on the contraction axis and put
    # energy / weather weights block-diagonally on the output lanes.
    def tcn_stack(we, ww):                    # (L, K, D, D) -> (L, K*2D, 2D)
        out = jnp.zeros((L, K * D2, D2), F32)
        for j in range(K):
            out = out.at[:, j * D2:j * D2 + D, 0:D].set(we[:, j])
            out = out.at[:, j * D2 + D:(j + 1) * D2, D:D2].set(ww[:, j])
        return out

    tW1 = tcn_stack(p["etcn_W1"], p["wtcn_W1"])
    tW2 = tcn_stack(p["etcn_W2"], p["wtcn_W2"])
    pp["tW"] = jnp.stack([tW1, tW2], axis=1).reshape(2 * L, K * D2, D2)
    tb1 = jnp.concatenate([p["etcn_b1"], p["wtcn_b1"]], -1)               # (L, 1, 2D)
    tb2 = jnp.concatenate([p["etcn_b2"], p["wtcn_b2"]], -1)
    pp["tb"] = jnp.stack([tb1, tb2], axis=1).reshape(2 * L, 1, D2)

    # Gated fusion: XS + XT == [HS | HT] @ [Wxs ; Wxt] + (bxs + bxt).
    pp["Wz"] = jnp.concatenate([p["gxs_W"], p["gxt_W"]], axis=0)          # (2D, D)
    pp["bz"] = p["gxs_b"] + p["gxt_b"]
    pp["Wh1"], pp["bh1"] = p["gh1_W"], p["gh1_b"]

    # Linear tail has no nonlinearity between FC_h conv2, out conv1, out conv2
    # -> fold into one (1, D) projection row and a scalar bias.
    w_tail = p["gh2_W"] @ p["out_W1"] @ p["out_W2"].T                     # (D, 1)
    pp["Wout"] = w_tail.T                                                 # (1, D)
    pp["bout"] = ((p["gh2_b"] @ p["out_W1"] + p["out_b1"]) @ p["out_W2"].T
                  + p["out_b2"])                                          # (1, 1)
    return pp


# ---------------------------------------------------------------------------
# Pure-JAX reference of the PyTorch module (used only to verify the kernel)
# ---------------------------------------------------------------------------
def _reference_forward(p, energy_input, weather_input, time_input):
    B, T, _ = energy_input.shape
    L, K = p["etcn_W1"].shape[0], p["etcn_W1"].shape[1]

    def emb(x, pre):
        cin = x.shape[-1]
        h = jnp.maximum(x.astype(F32) @ p[pre + "_W1"][:cin] + p[pre + "_b1"], 0.0)
        return h @ p[pre + "_W2"] + p[pre + "_b2"]

    time_emb = emb(time_input, "time")
    h_e = emb(energy_input, "en") + time_emb
    h_w = emb(weather_input, "we") + time_emb

    def shift(x, s):
        if s <= 0:
            return x
        if s >= T:
            return jnp.zeros_like(x)
        return jnp.pad(x, ((0, 0), (s, 0), (0, 0)))[:, :T, :]

    def tcn(h, w1, b1, w2, b2):
        for lvl in range(L):
            dil = 2 ** lvl
            res = h
            c1 = jnp.maximum(
                b1[lvl] + sum(shift(h, (K - 1 - j) * dil) @ w1[lvl, j]
                              for j in range(K)), 0.0)
            c2 = jnp.maximum(
                b2[lvl] + sum(shift(c1, (K - 1 - j) * dil) @ w2[lvl, j]
                              for j in range(K)), 0.0)
            h = jnp.maximum(c2 + res, 0.0)
        return h

    hs = tcn(h_e, p["etcn_W1"], p["etcn_b1"], p["etcn_W2"], p["etcn_b2"])
    ht = tcn(h_w, p["wtcn_W1"], p["wtcn_b1"], p["wtcn_W2"], p["wtcn_b2"])

    z = jax.nn.sigmoid(hs @ p["gxs_W"] + p["gxs_b"] + ht @ p["gxt_W"] + p["gxt_b"])
    hg = z * hs + (1.0 - z) * ht
    hg = jnp.maximum(hg @ p["gh1_W"] + p["gh1_b"], 0.0)
    hg = hg @ p["gh2_W"] + p["gh2_b"]

    h_last = hg[:, -1, :]
    o = h_last @ p["out_W1"] + p["out_b1"]
    return jnp.sum(o * p["out_W2"], axis=-1, keepdims=True) + p["out_b2"]


# ---------------------------------------------------------------------------
if __name__ == "__main__":
    B, T = 2, 8                      # batch, seq_len
    energy_in, weather_in, time_in, emb = 4, 5, 3, 32
    key = jax.random.PRNGKey(0)
    kp, ke, kw, kt = jax.random.split(key, 4)

    params = init_params(kp, energy_in, weather_in, time_in, emb)
    packed = pack_params(params)

    energy_input = jax.random.normal(ke, (B, T, energy_in), dtype=F32)
    weather_input = jax.random.normal(kw, (B, T, weather_in - 1), dtype=F32)
    time_input = jax.random.normal(kt, (B, T, time_in), dtype=F32)

    out = t2snt_forward(packed, energy_input, weather_input, time_input)
    jax.block_until_ready(out)
    assert out.shape == (B, 1) and out.dtype == F32

    ref = _reference_forward(params, energy_input, weather_input, time_input)
    assert jnp.allclose(out, ref, rtol=5e-2, atol=5e-3), (out, ref)
    print("KERNEL_OK")
</pallas_src>

<mosaic_0001>
module attributes {stable_mosaic.version = 11 : i64} {
  func.func @_t2snt_kernel(%arg0: memref<16x32xf32, #tpu.memory_space<vmem>>, %arg1: memref<16x64xi32, #tpu.memory_space<vmem>>, %arg2: memref<2x16xf32, #tpu.memory_space<vmem>>, %arg3: memref<32x96xf32, #tpu.memory_space<vmem>>, %arg4: memref<96x64xf32, #tpu.memory_space<vmem>>, %arg5: memref<1x64xf32, #tpu.memory_space<vmem>>, %arg6: memref<6x192x64xf32, #tpu.memory_space<vmem>>, %arg7: memref<6x1x64xf32, #tpu.memory_space<vmem>>, %arg8: memref<64x32xf32, #tpu.memory_space<vmem>>, %arg9: memref<1x32xf32, #tpu.memory_space<vmem>>, %arg10: memref<32x32xf32, #tpu.memory_space<vmem>>, %arg11: memref<1x32xf32, #tpu.memory_space<vmem>>, %arg12: memref<1x32xf32, #tpu.memory_space<vmem>>, %arg13: memref<1x1xf32, #tpu.memory_space<vmem>>, %arg14: memref<2x1xf32, #tpu.memory_space<vmem>>) attributes {dimension_semantics = [], scalar_prefetch = 0 : i64, scratch_operands = 0 : i64, tpu.core_type = #tpu.core_type<tc>} {
    %c0 = arith.constant 0 : index
    %c0_0 = arith.constant 0 : index
    %0 = vector.load %arg1[%c0, %c0_0] : memref<16x64xi32, #tpu.memory_space<vmem>>, vector<16x64xi32>
    %c0_1 = arith.constant 0 : index
    %c0_2 = arith.constant 0 : index
    %1 = vector.load %arg0[%c0_1, %c0_2] : memref<16x32xf32, #tpu.memory_space<vmem>>, vector<16x32xf32>
    %c0_3 = arith.constant 0 : index
    %c0_4 = arith.constant 0 : index
    %2 = vector.load %arg3[%c0_3, %c0_4] : memref<32x96xf32, #tpu.memory_space<vmem>>, vector<32x96xf32>
    %cst = arith.constant dense<0.000000e+00> : vector<16x96xf32>
    %3 = tpu.matmul %1, %2, %cst {dimension_numbers = #tpu.dot_dimension_numbers<[1], [0], [0], [1], [0, 0, 1, 1], [], []>} : vector<16x32xf32>, vector<32x96xf32>, vector<16x96xf32> -> vector<16x96xf32>
    %cst_5 = arith.constant 0.000000e+00 : f32
    %4 = vector.broadcast %cst_5 : f32 to vector<16x96xf32>
    %5 = arith.maximumf %3, %4 : vector<16x96xf32>
    %c0_6 = arith.constant 0 : index
    %c0_7 = arith.constant 0 : index
    %6 = vector.load %arg4[%c0_6, %c0_7] : memref<96x64xf32, #tpu.memory_space<vmem>>, vector<96x64xf32>
    %cst_8 = arith.constant dense<0.000000e+00> : vector<16x64xf32>
    %7 = tpu.matmul %5, %6, %cst_8 {dimension_numbers = #tpu.dot_dimension_numbers<[1], [0], [0], [1], [0, 0, 1, 1], [], []>} : vector<16x96xf32>, vector<96x64xf32>, vector<16x64xf32> -> vector<16x64xf32>
    %c0_9 = arith.constant 0 : index
    %c0_10 = arith.constant 0 : index
    %8 = vector.load %arg5[%c0_9, %c0_10] : memref<1x64xf32, #tpu.memory_space<vmem>>, vector<1x64xf32>
    %9 = vector.broadcast %8 : vector<1x64xf32> to vector<16x64xf32>
    %10 = arith.addf %7, %9 : vector<16x64xf32>
    %c2_i32 = arith.constant 2 : i32
    %11 = vector.broadcast %c2_i32 : i32 to vector<16x64xi32>
    %12 = arith.cmpi sge, %0, %11 : vector<16x64xi32>
    %cst_11 = arith.constant 1.000000e+00 : f32
    %cst_12 = arith.constant 0.000000e+00 : f32
    %13 = vector.broadcast %cst_11 : f32 to vector<16x64xf32>
    %14 = vector.broadcast %cst_12 : f32 to vector<16x64xf32>
    %15 = arith.select %12, %13, %14 : vector<16x64xi1>, vector<16x64xf32>
    %c2_i32_13 = arith.constant 2 : i32
    %16 = tpu.dynamic_rotate %10 by %c2_i32_13 dim 0 : vector<16x64xf32>, i32 -> vector<16x64xf32>
    %17 = arith.mulf %15, %16 : vector<16x64xf32>
    %c1_i32 = arith.constant 1 : i32
    %18 = vector.broadcast %c1_i32 : i32 to vector<16x64xi32>
    %19 = arith.cmpi sge, %0, %18 : vector<16x64xi32>
    %cst_14 = arith.constant 1.000000e+00 : f32
    %cst_15 = arith.constant 0.000000e+00 : f32
    %20 = vector.broadcast %cst_14 : f32 to vector<16x64xf32>
    %21 = vector.broadcast %cst_15 : f32 to vector<16x64xf32>
    %22 = arith.select %19, %20, %21 : vector<16x64xi1>, vector<16x64xf32>
    %c1_i32_16 = arith.constant 1 : i32
    %23 = tpu.dynamic_rotate %10 by %c1_i32_16 dim 0 : vector<16x64xf32>, i32 -> vector<16x64xf32>
    %24 = arith.mulf %22, %23 : vector<16x64xf32>
    %25 = tpu.concatenate %17, %24, %10 in 1 : vector<16x64xf32>, vector<16x64xf32>, vector<16x64xf32> -> vector<16x192xf32>
    %c0_17 = arith.constant 0 : index
    %c0_18 = arith.constant 0 : index
    %c0_19 = arith.constant 0 : index
    %26 = vector.load %arg6[%c0_17, %c0_18, %c0_19] : memref<6x192x64xf32, #tpu.memory_space<vmem>>, vector<1x192x64xf32>
    %27 = vector.shape_cast %26 : vector<1x192x64xf32> to vector<192x64xf32>
    %cst_20 = arith.constant dense<0.000000e+00> : vector<16x64xf32>
    %28 = tpu.matmul %25, %27, %cst_20 {dimension_numbers = #tpu.dot_dimension_numbers<[1], [0], [0], [1], [0, 0, 1, 1], [], []>} : vector<16x192xf32>, vector<192x64xf32>, vector<16x64xf32> -> vector<16x64xf32>
    %c0_21 = arith.constant 0 : index
    %c0_22 = arith.constant 0 : index
    %c0_23 = arith.constant 0 : index
    %29 = vector.load %arg7[%c0_21, %c0_22, %c0_23] : memref<6x1x64xf32, #tpu.memory_space<vmem>>, vector<1x1x64xf32>
    %30 = vector.shape_cast %29 : vector<1x1x64xf32> to vector<1x64xf32>
    %31 = vector.broadcast %30 : vector<1x64xf32> to vector<16x64xf32>
    %32 = arith.addf %28, %31 : vector<16x64xf32>
    %cst_24 = arith.constant 0.000000e+00 : f32
    %33 = vector.broadcast %cst_24 : f32 to vector<16x64xf32>
    %34 = arith.maximumf %32, %33 : vector<16x64xf32>
    %c2_i32_25 = arith.constant 2 : i32
    %35 = tpu.dynamic_rotate %34 by %c2_i32_25 dim 0 : vector<16x64xf32>, i32 -> vector<16x64xf32>
    %36 = arith.mulf %15, %35 : vector<16x64xf32>
    %c1_i32_26 = arith.constant 1 : i32
    %37 = tpu.dynamic_rotate %34 by %c1_i32_26 dim 0 : vector<16x64xf32>, i32 -> vector<16x64xf32>
    %38 = arith.mulf %22, %37 : vector<16x64xf32>
    %39 = tpu.concatenate %36, %38, %34 in 1 : vector<16x64xf32>, vector<16x64xf32>, vector<16x64xf32> -> vector<16x192xf32>
    %c1 = arith.constant 1 : index
    %c0_27 = arith.constant 0 : index
    %c0_28 = arith.constant 0 : index
    %40 = vector.load %arg6[%c1, %c0_27, %c0_28] : memref<6x192x64xf32, #tpu.memory_space<vmem>>, vector<1x192x64xf32>
    %41 = vector.shape_cast %40 : vector<1x192x64xf32> to vector<192x64xf32>
    %cst_29 = arith.constant dense<0.000000e+00> : vector<16x64xf32>
    %42 = tpu.matmul %39, %41, %cst_29 {dimension_numbers = #tpu.dot_dimension_numbers<[1], [0], [0], [1], [0, 0, 1, 1], [], []>} : vector<16x192xf32>, vector<192x64xf32>, vector<16x64xf32> -> vector<16x64xf32>
    %c1_30 = arith.constant 1 : index
    %c0_31 = arith.constant 0 : index
    %c0_32 = arith.constant 0 : index
    %43 = vector.load %arg7[%c1_30, %c0_31, %c0_32] : memref<6x1x64xf32, #tpu.memory_space<vmem>>, vector<1x1x64xf32>
    %44 = vector.shape_cast %43 : vector<1x1x64xf32> to vector<1x64xf32>
    %45 = vector.broadcast %44 : vector<1x64xf32> to vector<16x64xf32>
    %46 = arith.addf %42, %45 : vector<16x64xf32>
    %cst_33 = arith.constant 0.000000e+00 : f32
    %47 = vector.broadcast %cst_33 : f32 to vector<16x64xf32>
    %48 = arith.maximumf %46, %47 : vector<16x64xf32>
    %49 = arith.addf %48, %10 : vector<16x64xf32>
    %cst_34 = arith.constant 0.000000e+00 : f32
    %50 = vector.broadcast %cst_34 : f32 to vector<16x64xf32>
    %51 = arith.maximumf %49, %50 : vector<16x64xf32>
    %c4_i32 = arith.constant 4 : i32
    %52 = vector.broadcast %c4_i32 : i32 to vector<16x64xi32>
    %53 = arith.cmpi sge, %0, %52 : vector<16x64xi32>
    %cst_35 = arith.constant 1.000000e+00 : f32
    %cst_36 = arith.constant 0.000000e+00 : f32
    %54 = vector.broadcast %cst_35 : f32 to vector<16x64xf32>
    %55 = vector.broadcast %cst_36 : f32 to vector<16x64xf32>
    %56 = arith.select %53, %54, %55 : vector<16x64xi1>, vector<16x64xf32>
    %c4_i32_37 = arith.constant 4 : i32
    %57 = tpu.dynamic_rotate %51 by %c4_i32_37 dim 0 : vector<16x64xf32>, i32 -> vector<16x64xf32>
    %58 = arith.mulf %56, %57 : vector<16x64xf32>
    %c2_i32_38 = arith.constant 2 : i32
    %59 = tpu.dynamic_rotate %51 by %c2_i32_38 dim 0 : vector<16x64xf32>, i32 -> vector<16x64xf32>
    %60 = arith.mulf %15, %59 : vector<16x64xf32>
    %61 = tpu.concatenate %58, %60, %51 in 1 : vector<16x64xf32>, vector<16x64xf32>, vector<16x64xf32> -> vector<16x192xf32>
    %c2 = arith.constant 2 : index
    %c0_39 = arith.constant 0 : index
    %c0_40 = arith.constant 0 : index
    %62 = vector.load %arg6[%c2, %c0_39, %c0_40] : memref<6x192x64xf32, #tpu.memory_space<vmem>>, vector<1x192x64xf32>
    %63 = vector.shape_cast %62 : vector<1x192x64xf32> to vector<192x64xf32>
    %cst_41 = arith.constant dense<0.000000e+00> : vector<16x64xf32>
    %64 = tpu.matmul %61, %63, %cst_41 {dimension_numbers = #tpu.dot_dimension_numbers<[1], [0], [0], [1], [0, 0, 1, 1], [], []>} : vector<16x192xf32>, vector<192x64xf32>, vector<16x64xf32> -> vector<16x64xf32>
    %c2_42 = arith.constant 2 : index
    %c0_43 = arith.constant 0 : index
    %c0_44 = arith.constant 0 : index
    %65 = vector.load %arg7[%c2_42, %c0_43, %c0_44] : memref<6x1x64xf32, #tpu.memory_space<vmem>>, vector<1x1x64xf32>
    %66 = vector.shape_cast %65 : vector<1x1x64xf32> to vector<1x64xf32>
    %67 = vector.broadcast %66 : vector<1x64xf32> to vector<16x64xf32>
    %68 = arith.addf %64, %67 : vector<16x64xf32>
    %cst_45 = arith.constant 0.000000e+00 : f32
    %69 = vector.broadcast %cst_45 : f32 to vector<16x64xf32>
    %70 = arith.maximumf %68, %69 : vector<16x64xf32>
    %c4_i32_46 = arith.constant 4 : i32
    %71 = tpu.dynamic_rotate %70 by %c4_i32_46 dim 0 : vector<16x64xf32>, i32 -> vector<16x64xf32>
    %72 = arith.mulf %56, %71 : vector<16x64xf32>
    %c2_i32_47 = arith.constant 2 : i32
    %73 = tpu.dynamic_rotate %70 by %c2_i32_47 dim 0 : vector<16x64xf32>, i32 -> vector<16x64xf32>
    %74 = arith.mulf %15, %73 : vector<16x64xf32>
    %75 = tpu.concatenate %72, %74, %70 in 1 : vector<16x64xf32>, vector<16x64xf32>, vector<16x64xf32> -> vector<16x192xf32>
    %c3 = arith.constant 3 : index
    %c0_48 = arith.constant 0 : index
    %c0_49 = arith.constant 0 : index
    %76 = vector.load %arg6[%c3, %c0_48, %c0_49] : memref<6x192x64xf32, #tpu.memory_space<vmem>>, vector<1x192x64xf32>
    %77 = vector.shape_cast %76 : vector<1x192x64xf32> to vector<192x64xf32>
    %cst_50 = arith.constant dense<0.000000e+00> : vector<16x64xf32>
    %78 = tpu.matmul %75, %77, %cst_50 {dimension_numbers = #tpu.dot_dimension_numbers<[1], [0], [0], [1], [0, 0, 1, 1], [], []>} : vector<16x192xf32>, vector<192x64xf32>, vector<16x64xf32> -> vector<16x64xf32>
    %c3_51 = arith.constant 3 : index
    %c0_52 = arith.constant 0 : index
    %c0_53 = arith.constant 0 : index
    %79 = vector.load %arg7[%c3_51, %c0_52, %c0_53] : memref<6x1x64xf32, #tpu.memory_space<vmem>>, vector<1x1x64xf32>
    %80 = vector.shape_cast %79 : vector<1x1x64xf32> to vector<1x64xf32>
    %81 = vector.broadcast %80 : vector<1x64xf32> to vector<16x64xf32>
    %82 = arith.addf %78, %81 : vector<16x64xf32>
    %cst_54 = arith.constant 0.000000e+00 : f32
    %83 = vector.broadcast %cst_54 : f32 to vector<16x64xf32>
    %84 = arith.maximumf %82, %83 : vector<16x64xf32>
    %85 = arith.addf %84, %51 : vector<16x64xf32>
    %cst_55 = arith.constant 0.000000e+00 : f32
    %86 = vector.broadcast %cst_55 : f32 to vector<16x64xf32>
    %87 = arith.maximumf %85, %86 : vector<16x64xf32>
    %cst_56 = arith.constant 0.000000e+00 : f32
    %88 = vector.broadcast %cst_56 : f32 to vector<16x64xf32>
    %c4_i32_57 = arith.constant 4 : i32
    %89 = tpu.dynamic_rotate %87 by %c4_i32_57 dim 0 : vector<16x64xf32>, i32 -> vector<16x64xf32>
    %90 = arith.mulf %56, %89 : vector<16x64xf32>
    %91 = tpu.concatenate %88, %90, %87 in 1 : vector<16x64xf32>, vector<16x64xf32>, vector<16x64xf32> -> vector<16x192xf32>
    %c4 = arith.constant 4 : index
    %c0_58 = arith.constant 0 : index
    %c0_59 = arith.constant 0 : index
    %92 = vector.load %arg6[%c4, %c0_58, %c0_59] : memref<6x192x64xf32, #tpu.memory_space<vmem>>, vector<1x192x64xf32>
    %93 = vector.shape_cast %92 : vector<1x192x64xf32> to vector<192x64xf32>
    %cst_60 = arith.constant dense<0.000000e+00> : vector<16x64xf32>
    %94 = tpu.matmul %91, %93, %cst_60 {dimension_numbers = #tpu.dot_dimension_numbers<[1], [0], [0], [1], [0, 0, 1, 1], [], []>} : vector<16x192xf32>, vector<192x64xf32>, vector<16x64xf32> -> vector<16x64xf32>
    %c4_61 = arith.constant 4 : index
    %c0_62 = arith.constant 0 : index
    %c0_63 = arith.constant 0 : index
    %95 = vector.load %arg7[%c4_61, %c0_62, %c0_63] : memref<6x1x64xf32, #tpu.memory_space<vmem>>, vector<1x1x64xf32>
    %96 = vector.shape_cast %95 : vector<1x1x64xf32> to vector<1x64xf32>
    %97 = vector.broadcast %96 : vector<1x64xf32> to vector<16x64xf32>
    %98 = arith.addf %94, %97 : vector<16x64xf32>
    %cst_64 = arith.constant 0.000000e+00 : f32
    %99 = vector.broadcast %cst_64 : f32 to vector<16x64xf32>
    %100 = arith.maximumf %98, %99 : vector<16x64xf32>
    %cst_65 = arith.constant 0.000000e+00 : f32
    %101 = vector.broadcast %cst_65 : f32 to vector<16x64xf32>
    %c4_i32_66 = arith.constant 4 : i32
    %102 = tpu.dynamic_rotate %100 by %c4_i32_66 dim 0 : vector<16x64xf32>, i32 -> vector<16x64xf32>
    %103 = arith.mulf %56, %102 : vector<16x64xf32>
    %104 = tpu.concatenate %101, %103, %100 in 1 : vector<16x64xf32>, vector<16x64xf32>, vector<16x64xf32> -> vector<16x192xf32>
    %c5 = arith.constant 5 : index
    %c0_67 = arith.constant 0 : index
    %c0_68 = arith.constant 0 : index
    %105 = vector.load %arg6[%c5, %c0_67, %c0_68] : memref<6x192x64xf32, #tpu.memory_space<vmem>>, vector<1x192x64xf32>
    %106 = vector.shape_cast %105 : vector<1x192x64xf32> to vector<192x64xf32>
    %cst_69 = arith.constant dense<0.000000e+00> : vector<16x64xf32>
    %107 = tpu.matmul %104, %106, %cst_69 {dimension_numbers = #tpu.dot_dimension_numbers<[1], [0], [0], [1], [0, 0, 1, 1], [], []>} : vector<16x192xf32>, vector<192x64xf32>, vector<16x64xf32> -> vector<16x64xf32>
    %c5_70 = arith.constant 5 : index
    %c0_71 = arith.constant 0 : index
    %c0_72 = arith.constant 0 : index
    %108 = vector.load %arg7[%c5_70, %c0_71, %c0_72] : memref<6x1x64xf32, #tpu.memory_space<vmem>>, vector<1x1x64xf32>
    %109 = vector.shape_cast %108 : vector<1x1x64xf32> to vector<1x64xf32>
    %110 = vector.broadcast %109 : vector<1x64xf32> to vector<16x64xf32>
    %111 = arith.addf %107, %110 : vector<16x64xf32>
    %cst_73 = arith.constant 0.000000e+00 : f32
    %112 = vector.broadcast %cst_73 : f32 to vector<16x64xf32>
    %113 = arith.maximumf %111, %112 : vector<16x64xf32>
    %114 = arith.addf %113, %87 : vector<16x64xf32>
    %cst_74 = arith.constant 0.000000e+00 : f32
    %115 = vector.broadcast %cst_74 : f32 to vector<16x64xf32>
    %116 = arith.maximumf %114, %115 : vector<16x64xf32>
    %c0_75 = arith.constant 0 : index
    %c0_76 = arith.constant 0 : index
    %117 = vector.load %arg2[%c0_75, %c0_76] : memref<2x16xf32, #tpu.memory_space<vmem>>, vector<2x16xf32>
    %cst_77 = arith.constant dense<0.000000e+00> : vector<2x64xf32>
    %118 = tpu.matmul %117, %116, %cst_77 {dimension_numbers = #tpu.dot_dimension_numbers<[1], [0], [0], [1], [0, 0, 1, 1], [], []>} : vector<2x16xf32>, vector<16x64xf32>, vector<2x64xf32> -> vector<2x64xf32>
    %119 = vector.extract_strided_slice %118 {offsets = [0, 0], sizes = [2, 32], strides = [1, 1]} : vector<2x64xf32> to vector<2x32xf32>
    %120 = vector.extract_strided_slice %118 {offsets = [0, 32], sizes = [2, 32], strides = [1, 1]} : vector<2x64xf32> to vector<2x32xf32>
    %c0_78 = arith.constant 0 : index
    %c0_79 = arith.constant 0 : index
    %121 = vector.load %arg8[%c0_78, %c0_79] : memref<64x32xf32, #tpu.memory_space<vmem>>, vector<64x32xf32>
    %cst_80 = arith.constant dense<0.000000e+00> : vector<2x32xf32>
    %122 = tpu.matmul %118, %121, %cst_80 {dimension_numbers = #tpu.dot_dimension_numbers<[1], [0], [0], [1], [0, 0, 1, 1], [], []>} : vector<2x64xf32>, vector<64x32xf32>, vector<2x32xf32> -> vector<2x32xf32>
    %c0_81 = arith.constant 0 : index
    %c0_82 = arith.constant 0 : index
    %123 = vector.load %arg9[%c0_81, %c0_82] : memref<1x32xf32, #tpu.memory_space<vmem>>, vector<1x32xf32>
    %124 = vector.broadcast %123 : vector<1x32xf32> to vector<2x32xf32>
    %125 = arith.addf %122, %124 : vector<2x32xf32>
    %126 = arith.negf %125 : vector<2x32xf32>
    %127 = math.exp %126 : vector<2x32xf32>
    %cst_83 = arith.constant 1.000000e+00 : f32
    %128 = vector.broadcast %cst_83 : f32 to vector<2x32xf32>
    %129 = arith.addf %128, %127 : vector<2x32xf32>
    %130 = arith.divf %128, %129 : vector<2x32xf32>
    %131 = arith.subf %119, %120 : vector<2x32xf32>
    %132 = arith.mulf %130, %131 : vector<2x32xf32>
    %133 = arith.addf %120, %132 : vector<2x32xf32>
    %c0_84 = arith.constant 0 : index
    %c0_85 = arith.constant 0 : index
    %134 = vector.load %arg10[%c0_84, %c0_85] : memref<32x32xf32, #tpu.memory_space<vmem>>, vector<32x32xf32>
    %cst_86 = arith.constant dense<0.000000e+00> : vector<2x32xf32>
    %135 = tpu.matmul %133, %134, %cst_86 {dimension_numbers = #tpu.dot_dimension_numbers<[1], [0], [0], [1], [0, 0, 1, 1], [], []>} : vector<2x32xf32>, vector<32x32xf32>, vector<2x32xf32> -> vector<2x32xf32>
    %c0_87 = arith.constant 0 : index
    %c0_88 = arith.constant 0 : index
    %136 = vector.load %arg11[%c0_87, %c0_88] : memref<1x32xf32, #tpu.memory_space<vmem>>, vector<1x32xf32>
    %137 = vector.broadcast %136 : vector<1x32xf32> to vector<2x32xf32>
    %138 = arith.addf %135, %137 : vector<2x32xf32>
    %cst_89 = arith.constant 0.000000e+00 : f32
    %139 = vector.broadcast %cst_89 : f32 to vector<2x32xf32>
    %140 = arith.maximumf %138, %139 : vector<2x32xf32>
    %c0_90 = arith.constant 0 : index
    %c0_91 = arith.constant 0 : index
    %141 = vector.load %arg12[%c0_90, %c0_91] : memref<1x32xf32, #tpu.memory_space<vmem>>, vector<1x32xf32>
    %142 = vector.broadcast %141 : vector<1x32xf32> to vector<2x32xf32>
    %143 = arith.mulf %140, %142 : vector<2x32xf32>
    %cst_92 = arith.constant dense<0.000000e+00> : vector<2xf32>
    %144 = vector.multi_reduction <add>, %143, %cst_92 [1] : vector<2x32xf32> to vector<2xf32>
    %145 = vector.shape_cast %144 : vector<2xf32> to vector<2x1xf32>
    %c0_93 = arith.constant 0 : index
    %c0_94 = arith.constant 0 : index
    %146 = vector.load %arg13[%c0_93, %c0_94] : memref<1x1xf32, #tpu.memory_space<vmem>>, vector<1x1xf32>
    %147 = vector.broadcast %146 : vector<1x1xf32> to vector<2x1xf32>
    %148 = arith.addf %145, %147 : vector<2x1xf32>
    %c0_95 = arith.constant 0 : index
    %c0_96 = arith.constant 0 : index
    %149 = vector.load %arg14[%c0_95, %c0_96] : memref<2x1xf32, #tpu.memory_space<vmem>>, vector<2x1xf32>
    tpu.vector_store %arg14[%c0_95, %c0_96], %148 {strides = array<i32>} : memref<2x1xf32, #tpu.memory_space<vmem>>, vector<2x1xf32>,
    return
  }
}

</mosaic_0001>

<llo_original>
// kernel: t2snt_forward.1
$region0: #{t2snt_forward.1}
  #allocation0 [shape = 'u32[]', space=smem, size = 0x4, offset = 0x4, fixed_abs, tag = 'smem constant byte address 0x4 - core index']
  #allocation1 [shape = 'u32[144,128]{1,0:T(1,128)}', space=vmem, size = 0x12000, scoped, tag = 'internal scratch']
  #allocation2 [shape = 'f32[1,1]{1,0:T(1,128)S(1)}', space=vmem, size = 0x200, scoped, tag = 'scoped memory for t2snt_forward.1']
  %s0 = inlined_call_operand.vmem [shape: f32[16,32], index: 0, kind: input, shape index: {}]
  %s1 = inlined_call_operand.vmem [shape: s32[16,64], index: 1, kind: input, shape index: {}]
  %s2 = inlined_call_operand.vmem [shape: f32[2,16], index: 2, kind: input, shape index: {}]
  %s3 = inlined_call_operand.vmem [shape: f32[32,96], index: 3, kind: input, shape index: {}]
  %s4 = inlined_call_operand.vmem [shape: f32[96,64], index: 4, kind: input, shape index: {}]
  %s5 = inlined_call_operand.vmem [shape: f32[1,64], index: 5, kind: input, shape index: {}]
  %s6 = inlined_call_operand.vmem [shape: f32[6,192,64], index: 6, kind: input, shape index: {}]
  %s7 = inlined_call_operand.vmem [shape: f32[6,1,64], index: 7, kind: input, shape index: {}]
  %s8 = inlined_call_operand.vmem [shape: f32[64,32], index: 8, kind: input, shape index: {}]
  %s9 = inlined_call_operand.vmem [shape: f32[1,32], index: 9, kind: input, shape index: {}]
  %s10 = inlined_call_operand.vmem [shape: f32[32,32], index: 10, kind: input, shape index: {}]
  %s11 = inlined_call_operand.vmem [shape: f32[1,32], index: 11, kind: input, shape index: {}]
  %s12 = inlined_call_operand.vmem [shape: f32[1,32], index: 12, kind: input, shape index: {}]
  %s13 = inlined_call_operand.<no memory space> [shape: f32[1,1], index: 13, kind: input, shape index: {}]
  %s14 = inlined_call_operand.vmem [shape: f32[2,1], index: 14, kind: output, shape index: {}]
  %s15 = sld [smem:[#allocation0]]
  $region66: #{t2snt_forward.1} parent=0
    _
  %s17 = ssub.s32 1, %s15
  %s18 = scalar_select 0, %s17, %s15
  %v19 = vstv %s13
  %20 = vst [vmem:[#allocation2] sm:$0x1] %v19
  // Predicated region
  $region2: #{t2snt_forward.1} parent=0 // pred_check
    _
  $region3: #{t2snt_forward.1} parent=0 // pred_check_branch
    %22 = sbr.rel (0) target = $region5
  $region4: #{t2snt_forward.1} parent=0 // pred_region
    _
  $region5: #{t2snt_forward.1} parent=0 // pred_fallthru
    _
  // Predicated region
  $region6: #{t2snt_forward.1} parent=0 // pred_check
    _
  $region7: #{t2snt_forward.1} parent=0 // pred_check_branch
    %24 = sbr.rel (0) target = $region9
  $region8: #{t2snt_forward.1} parent=0 // pred_region
    _
  $region9: #{t2snt_forward.1} parent=0 // pred_fallthru
    _
  // Predicated region
  $region10: #{t2snt_forward.1} parent=0 // pred_check
    _
  $region11: #{t2snt_forward.1} parent=0 // pred_check_branch
    %26 = sbr.rel (0) target = $region13
  $region12: #{t2snt_forward.1} parent=0 // pred_region
    _
  $region13: #{t2snt_forward.1} parent=0 // pred_fallthru
    _
  // Predicated region
  $region14: #{t2snt_forward.1} parent=0 // pred_check
    _
  $region15: #{t2snt_forward.1} parent=0 // pred_check_branch
    %28 = sbr.rel (0) target = $region17
  $region16: #{t2snt_forward.1} parent=0 // pred_region
    _
  $region17: #{t2snt_forward.1} parent=0 // pred_fallthru
    _
  // Predicated region
  $region18: #{t2snt_forward.1} parent=0 // pred_check
    _
  $region19: #{t2snt_forward.1} parent=0 // pred_check_branch
    %30 = sbr.rel (0) target = $region21
  $region20: #{t2snt_forward.1} parent=0 // pred_region
    _
  $region21: #{t2snt_forward.1} parent=0 // pred_fallthru
    _
  // Predicated region
  $region22: #{t2snt_forward.1} parent=0 // pred_check
    _
  $region23: #{t2snt_forward.1} parent=0 // pred_check_branch
    %32 = sbr.rel (0) target = $region25
  $region24: #{t2snt_forward.1} parent=0 // pred_region
    _
  $region25: #{t2snt_forward.1} parent=0 // pred_fallthru
    _
  // Predicated region
  $region26: #{t2snt_forward.1} parent=0 // pred_check
    _
  $region27: #{t2snt_forward.1} parent=0 // pred_check_branch
    %34 = sbr.rel (0) target = $region29
  $region28: #{t2snt_forward.1} parent=0 // pred_region
    _
  $region29: #{t2snt_forward.1} parent=0 // pred_fallthru
    _
  // Predicated region
  $region30: #{t2snt_forward.1} parent=0 // pred_check
    _
  $region31: #{t2snt_forward.1} parent=0 // pred_check_branch
    %36 = sbr.rel (0) target = $region33
  $region32: #{t2snt_forward.1} parent=0 // pred_region
    _
  $region33: #{t2snt_forward.1} parent=0 // pred_fallthru
    _
  // Predicated region
  $region34: #{t2snt_forward.1} parent=0 // pred_check
    _
  $region35: #{t2snt_forward.1} parent=0 // pred_check_branch
    %38 = sbr.rel (0) target = $region37
  $region36: #{t2snt_forward.1} parent=0 // pred_region
    _
  $region37: #{t2snt_forward.1} parent=0 // pred_fallthru
    _
  // Predicated region
  $region38: #{t2snt_forward.1} parent=0 // pred_check
    _
  $region39: #{t2snt_forward.1} parent=0 // pred_check_branch
    %40 = sbr.rel (0) target = $region41
  $region40: #{t2snt_forward.1} parent=0 // pred_region
    _
  $region41: #{t2snt_forward.1} parent=0 // pred_fallthru
    _
  // Predicated region
  $region42: #{t2snt_forward.1} parent=0 // pred_check
    _
  $region43: #{t2snt_forward.1} parent=0 // pred_check_branch
    %42 = sbr.rel (0) target = $region45
  $region44: #{t2snt_forward.1} parent=0 // pred_region
    _
  $region45: #{t2snt_forward.1} parent=0 // pred_fallthru
    _
  // Predicated region
  $region46: #{t2snt_forward.1} parent=0 // pred_check
    _
  $region47: #{t2snt_forward.1} parent=0 // pred_check_branch
    %44 = sbr.rel (0) target = $region49
  $region48: #{t2snt_forward.1} parent=0 // pred_region
    _
  $region49: #{t2snt_forward.1} parent=0 // pred_fallthru
    _
  // Predicated region
  $region50: #{t2snt_forward.1} parent=0 // pred_check
    _
  $region51: #{t2snt_forward.1} parent=0 // pred_check_branch
    %46 = sbr.rel (0) target = $region53
  $region52: #{t2snt_forward.1} parent=0 // pred_region
    _
  $region53: #{t2snt_forward.1} parent=0 // pred_fallthru
    _
  // Predicated region
  $region54: #{t2snt_forward.1} parent=0 // pred_check
    _
  $region55: #{t2snt_forward.1} parent=0 // pred_check_branch
    %48 = sbr.rel (0) target = $region57
  $region56: #{t2snt_forward.1} parent=0 // pred_region
    _
  $region57: #{t2snt_forward.1} parent=0 // pred_fallthru
    _
  %v49 = vld [vmem:[%s1] sm:$0xff]
  %v50 = vld [vmem:[%s1 + $0x8] sm:$0xff]
  %v51 = vld [vmem:[%s0] sm:$0xff]
  %v52 = vld [vmem:[%s0 + $0x8] sm:$0xff]
  %v53 = vld [vmem:[%s3] sm:$0xff]
  %v54 = vld [vmem:[%s3 + $0x8] sm:$0xff]
  %v55 = vld [vmem:[%s3 + $0x10] sm:$0xff]
  %v56 = vld [vmem:[%s3 + $0x18] sm:$0xff]
  %vm57 = vcmask 261120
  %v59 = vsel %vm57, %v51, 0
  %v62 = vsel %vm57, %v52, 0
  %64 = vmatprep.subr.mxu0 0.0
  %65 = vmatpush1.msra.mxu0 %v53
  %66 = vmatprep.subr.mxu0 0.0
  %67 = vmatpush1.msra.mxu0 %v54
  %68 = vmatprep.subr.mxu0 0.0
  %69 = vmatpush1.msra.mxu0 %v55
  %70 = vmatprep.subr.mxu0 0.0
  %71 = vmatpush1.msra.mxu0 %v56
  %72 = vmatprep.subr.mxu0 0.0
  %73 = vmatpush1.msra.mxu0 0.0
  %74 = vmatprep.subr.mxu0 0.0
  %75 = vmatpush1.msra.mxu0 0.0
  %76 = vmatprep.subr.mxu0 0.0
  %77 = vmatpush1.msra.mxu0 0.0
  %78 = vmatprep.subr.mxu0 0.0
  %79 = vmatpush1.msra.mxu0 0.0
  %80 = vmatprep.subr.mxu0 0.0
  %81 = vmatpush1.msra.mxu0 0.0
  %82 = vmatprep.subr.mxu0 0.0
  %83 = vmatpush1.msra.mxu0 0.0
  %84 = vmatprep.subr.mxu0 0.0
  %85 = vmatpush1.msra.mxu0 0.0
  %86 = vmatprep.subr.mxu0 0.0
  %87 = vmatpush1.msra.mxu0 0.0
  %88 = vmatprep.subr.mxu0 0.0
  %89 = vmatpush1.msra.mxu0 0.0
  %90 = vmatprep.subr.mxu0 0.0
  %91 = vmatpush1.msra.mxu0 0.0
  %92 = vmatprep.subr.mxu0 0.0
  %93 = vmatpush1.msra.mxu0 0.0
  %94 = vmatprep.subr.mxu0 0.0
  %95 = vmatpush1.msra.mxu0 0.0
  %96 = vmatprep.subr.mxu0 0.0
  %97 = vmatpush1.msra.mxu0 0.0
  %98 = vmatprep.subr.mxu0 0.0
  %99 = vmatpush1.msra.mxu0 0.0
  %100 = vmatprep.subr.mxu0 0.0
  %101 = vmatpush1.msra.mxu0 0.0
  %102 = vmatprep.subr.mxu0 0.0
  %103 = vmatpush1.msra.mxu0 0.0
  %104 = vmatprep.subr.mxu0 0.0
  %105 = vmatpush1.msra.mxu0 0.0
  %106 = vmatprep.subr.mxu0 0.0
  %107 = vmatpush1.msra.mxu0 0.0
  %108 = vmatprep.subr.mxu0 0.0
  %109 = vmatpush1.msra.mxu0 0.0
  %110 = vmatprep.subr.mxu0 0.0
  %111 = vmatpush1.msra.mxu0 0.0
  %112 = vmatprep.subr.mxu0 0.0
  %113 = vmatpush1.msra.mxu0 0.0
  %114 = vmatprep.subr.mxu0 0.0
  %115 = vmatpush1.msra.mxu0 0.0
  %116 = vmatprep.subr.mxu0 0.0
  %117 = vmatpush1.msra.mxu0 0.0
  %118 = vmatprep.subr.mxu0 0.0
  %119 = vmatpush1.msra.mxu0 0.0
  %120 = vmatprep.subr.mxu0 0.0
  %121 = vmatpush1.msra.mxu0 0.0
  %122 = vmatprep.subr.mxu0 0.0
  %123 = vmatpush1.msra.mxu0 0.0
  %124 = vmatprep.subr.mxu0 0.0
  %125 = vmatpush1.msra.mxu0 0.0
  %126 = vmatprep.subr.mxu0 0.0
  %127 = vmatpush1.msra.mxu0 0.0
  %128 = vmatprep.mubr.f32.mxu0 0.0
  %129 = vmatmul.mubr.f32.gmra.mrb[0].mxu0 %v59
  %v130 = vpop.f32.mrb[0].mxu0
  %v131 = vadd.f32 0.0, %v130
  %v132 = vpop.f32.mrb[0].mxu0
  %133 = vmatprep.mubr.f32.mxu0 0.0
  %134 = vmatmul.mubr.f32.gmra.mrb[0].mxu0 %v62
  %v135 = vpop.f32.mrb[0].mxu0
  %v136 = vadd.f32 0.0, %v135
  %v137 = vpop.f32.mrb[0].mxu0
  %138 = vdwg.mxu0
  %v139 = vmax.f32 %v131, 0.0
  %v140 = vmax.f32 %v136, 0.0
  %v141 = vld [vmem:[%s4] sm:$0xff]
  %v142 = vld [vmem:[%s4 + $0x8] sm:$0xff]
  %v143 = vld [vmem:[%s4 + $0x10] sm:$0xff]
  %v144 = vld [vmem:[%s4 + $0x18] sm:$0xff]
  %v145 = vld [vmem:[%s4 + $0x20] sm:$0xff]
  %v146 = vld [vmem:[%s4 + $0x28] sm:$0xff]
  %v147 = vld [vmem:[%s4 + $0x30] sm:$0xff]
  %v148 = vld [vmem:[%s4 + $0x38] sm:$0xff]
  %v149 = vld [vmem:[%s4 + $0x40] sm:$0xff]
  %v150 = vld [vmem:[%s4 + $0x48] sm:$0xff]
  %v151 = vld [vmem:[%s4 + $0x50] sm:$0xff]
  %v152 = vld [vmem:[%s4 + $0x58] sm:$0xff]
  %v153 = vld [vmem:[%s5] sm:$0x1]
  %v155 = vlaneseq
  %v156 = vshrl.u32 %v155, 7
  %v157 = vsub.s32 0, %v156
  %v158 = vrot.slane %v153, %v157
  %vm160 = vcmask 785408
  %v162 = vsel %vm160, %v139, 0
  %v165 = vsel %vm160, %v140, 0
  %167 = vmatprep.subr.mxu0 0.0
  %168 = vmatpush1.msra.mxu0 %v141
  %169 = vmatprep.subr.mxu0 0.0
  %170 = vmatpush1.msra.mxu0 %v142
  %171 = vmatprep.subr.mxu0 0.0
  %172 = vmatpush1.msra.mxu0 %v143
  %173 = vmatprep.subr.mxu0 0.0
  %174 = vmatpush1.msra.mxu0 %v144
  %175 = vmatprep.subr.mxu0 0.0
  %176 = vmatpush1.msra.mxu0 %v145
  %177 = vmatprep.subr.mxu0 0.0
  %178 = vmatpush1.msra.mxu0 %v146
  %179 = vmatprep.subr.mxu0 0.0
  %180 = vmatpush1.msra.mxu0 %v147
  %181 = vmatprep.subr.mxu0 0.0
  %182 = vmatpush1.msra.mxu0 %v148
  %183 = vmatprep.subr.mxu0 0.0
  %184 = vmatpush1.msra.mxu0 %v149
  %185 = vmatprep.subr.mxu0 0.0
  %186 = vmatpush1.msra.mxu0 %v150
  %187 = vmatprep.subr.mxu0 0.0
  %188 = vmatpush1.msra.mxu0 %v151
  %189 = vmatprep.subr.mxu0 0.0
  %190 = vmatpush1.msra.mxu0 %v152
  %191 = vmatprep.subr.mxu0 0.0
  %192 = vmatpush1.msra.mxu0 0.0
  %193 = vmatprep.subr.mxu0 0.0
  %194 = vmatpush1.msra.mxu0 0.0
  %195 = vmatprep.subr.mxu0 0.0
  %196 = vmatpush1.msra.mxu0 0.0
  %197 = vmatprep.subr.mxu0 0.0
  %198 = vmatpush1.msra.mxu0 0.0
  %199 = vmatprep.subr.mxu0 0.0
  %200 = vmatpush1.msra.mxu0 0.0
  %201 = vmatprep.subr.mxu0 0.0
  %202 = vmatpush1.msra.mxu0 0.0
  %203 = vmatprep.subr.mxu0 0.0
  %204 = vmatpush1.msra.mxu0 0.0
  %205 = vmatprep.subr.mxu0 0.0
  %206 = vmatpush1.msra.mxu0 0.0
  %207 = vmatprep.subr.mxu0 0.0
  %208 = vmatpush1.msra.mxu0 0.0
  %209 = vmatprep.subr.mxu0 0.0
  %210 = vmatpush1.msra.mxu0 0.0
  %211 = vmatprep.subr.mxu0 0.0
  %212 = vmatpush1.msra.mxu0 0.0
  %213 = vmatprep.subr.mxu0 0.0
  %214 = vmatpush1.msra.mxu0 0.0
  %215 = vmatprep.subr.mxu0 0.0
  %216 = vmatpush1.msra.mxu0 0.0
  %217 = vmatprep.subr.mxu0 0.0
  %218 = vmatpush1.msra.mxu0 0.0
  %219 = vmatprep.subr.mxu0 0.0
  %220 = vmatpush1.msra.mxu0 0.0
  %221 = vmatprep.subr.mxu0 0.0
  %222 = vmatpush1.msra.mxu0 0.0
  %223 = vmatprep.subr.mxu0 0.0
  %224 = vmatpush1.msra.mxu0 0.0
  %225 = vmatprep.subr.mxu0 0.0
  %226 = vmatpush1.msra.mxu0 0.0
  %227 = vmatprep.subr.mxu0 0.0
  %228 = vmatpush1.msra.mxu0 0.0
  %229 = vmatprep.subr.mxu0 0.0
  %230 = vmatpush1.msra.mxu0 0.0
  %231 = vmatprep.mubr.f32.mxu0 0.0
  %232 = vmatmul.mubr.f32.gmra.mrb[0].mxu0 %v162
  %v233 = vpop.f32.mrb[0].mxu0
  %v234 = vadd.f32 %v158, %v233
  %v235 = vpop.f32.mrb[0].mxu0
  %236 = vmatprep.mubr.f32.mxu0 0.0
  %237 = vmatmul.mubr.f32.gmra.mrb[0].mxu0 %v165
  %v238 = vpop.f32.mrb[0].mxu0
  %v239 = vadd.f32 %v158, %v238
  %v240 = vpop.f32.mrb[0].mxu0
  %241 = vdwg.mxu0
  %vm242 = vcmp.ge.s32.totalorder %v49, 2
  %vm243 = vcmp.ge.s32.totalorder %v50, 2
  %v244 = vsel %vm242, 1.0, 0.0
  %v245 = vsel %vm243, 1.0, 0.0
  %v246 = vrot.slane %v234, 6
  %v247 = vrot.slane %v239, 6
  %v248 = vlaneseq
  %v249 = vshrl.u32 %v248, 7
  %vm250 = vcmp.lt.s32.totalorder %v249, 2
  %v251 = vsel %vm250, %v246, %v247
  %v252 = vsel %vm250, %v247, %v246
  %v253 = vmul.f32 %v244, %v252
  %v254 = vmul.f32 %v245, %v251
  %vm255 = vcmp.ge.s32.totalorder %v49, 1
  %vm256 = vcmp.ge.s32.totalorder %v50, 1
  %v257 = vsel %vm255, 1.0, 0.0
  %v258 = vsel %vm256, 1.0, 0.0
  %v259 = vrot.slane %v234, 7
  %v260 = vrot.slane %v239, 7
  %vm261 = vcmp.lt.s32.totalorder %v249, 1
  %v262 = vsel %vm261, %v259, %v260
  %v263 = vsel %vm261, %v260, %v259
  %v264 = vmul.f32 %v257, %v263
  %v265 = vmul.f32 %v258, %v262
  %268 = vrot.lane.b32.xlu0 %v264, 64
  %v269 = vpop.permute.xlu0 %268
  %270 = vrot.lane.b32.xlu0 %v265, 64
  %v271 = vpop.permute.xlu0 %270
  %vm274 = vcmask 523264
  %v275 = vsel %vm274, %v253, %v269
  %v276 = vsel %vm274, %v254, %v271
  %v277 = vld [vmem:[%s6] sm:$0xff]
  %v278 = vld [vmem:[%s6 + $0x8] sm:$0xff]
  %v279 = vld [vmem:[%s6 + $0x10] sm:$0xff]
  %v280 = vld [vmem:[%s6 + $0x18] sm:$0xff]
  %v281 = vld [vmem:[%s6 + $0x20] sm:$0xff]
  %v282 = vld [vmem:[%s6 + $0x28] sm:$0xff]
  %v283 = vld [vmem:[%s6 + $0x30] sm:$0xff]
  %v284 = vld [vmem:[%s6 + $0x38] sm:$0xff]
  %v285 = vld [vmem:[%s6 + $0x40] sm:$0xff]
  %v286 = vld [vmem:[%s6 + $0x48] sm:$0xff]
  %v287 = vld [vmem:[%s6 + $0x50] sm:$0xff]
  %v288 = vld [vmem:[%s6 + $0x58] sm:$0xff]
  %v289 = vld [vmem:[%s6 + $0x60] sm:$0xff]
  %v290 = vld [vmem:[%s6 + $0x68] sm:$0xff]
  %v291 = vld [vmem:[%s6 + $0x70] sm:$0xff]
  %v292 = vld [vmem:[%s6 + $0x78] sm:$0xff]
  %v293 = vld [vmem:[%s6 + $0x80] sm:$0xff]
  %v294 = vld [vmem:[%s6 + $0x88] sm:$0xff]
  %v295 = vld [vmem:[%s6 + $0x90] sm:$0xff]
  %v296 = vld [vmem:[%s6 + $0x98] sm:$0xff]
  %v297 = vld [vmem:[%s6 + $0xa0] sm:$0xff]
  %v298 = vld [vmem:[%s6 + $0xa8] sm:$0xff]
  %v299 = vld [vmem:[%s6 + $0xb0] sm:$0xff]
  %v300 = vld [vmem:[%s6 + $0xb8] sm:$0xff]
  %v301 = vld [vmem:[%s7] sm:$0x1]
  %v303 = vlaneseq
  %v304 = vshrl.u32 %v303, 7
  %v305 = vsub.s32 0, %v304
  %v306 = vrot.slane %v301, %v305
  %v309 = vsel %vm274, %v234, 0
  %v312 = vsel %vm274, %v239, 0
  %314 = vmatprep.subr.mxu0 0.0
  %315 = vmatpush1.msra.mxu0 %v277
  %316 = vmatprep.subr.mxu0 0.0
  %317 = vmatpush1.msra.mxu0 %v278
  %318 = vmatprep.subr.mxu0 0.0
  %319 = vmatpush1.msra.mxu0 %v279
  %320 = vmatprep.subr.mxu0 0.0
  %321 = vmatpush1.msra.mxu0 %v280
  %322 = vmatprep.subr.mxu0 0.0
  %323 = vmatpush1.msra.mxu0 %v281
  %324 = vmatprep.subr.mxu0 0.0
  %325 = vmatpush1.msra.mxu0 %v282
  %326 = vmatprep.subr.mxu0 0.0
  %327 = vmatpush1.msra.mxu0 %v283
  %328 = vmatprep.subr.mxu0 0.0
  %329 = vmatpush1.msra.mxu0 %v284
  %330 = vmatprep.subr.mxu0 0.0
  %331 = vmatpush1.msra.mxu0 %v285
  %332 = vmatprep.subr.mxu0 0.0
  %333 = vmatpush1.msra.mxu0 %v286
  %334 = vmatprep.subr.mxu0 0.0
  %335 = vmatpush1.msra.mxu0 %v287
  %336 = vmatprep.subr.mxu0 0.0
  %337 = vmatpush1.msra.mxu0 %v288
  %338 = vmatprep.subr.mxu0 0.0
  %339 = vmatpush1.msra.mxu0 %v289
  %340 = vmatprep.subr.mxu0 0.0
  %341 = vmatpush1.msra.mxu0 %v290
  %342 = vmatprep.subr.mxu0 0.0
  %343 = vmatpush1.msra.mxu0 %v291
  %344 = vmatprep.subr.mxu0 0.0
  %345 = vmatpush1.msra.mxu0 %v292
  %346 = vmatprep.subr.mxu0 0.0
  %347 = vmatpush1.msra.mxu0 %v293
  %348 = vmatprep.subr.mxu0 0.0
  %349 = vmatpush1.msra.mxu0 %v294
  %350 = vmatprep.subr.mxu0 0.0
  %351 = vmatpush1.msra.mxu0 %v295
  %352 = vmatprep.subr.mxu0 0.0
  %353 = vmatpush1.msra.mxu0 %v296
  %354 = vmatprep.subr.mxu0 0.0
  %355 = vmatpush1.msra.mxu0 %v297
  %356 = vmatprep.subr.mxu0 0.0
  %357 = vmatpush1.msra.mxu0 %v298
  %358 = vmatprep.subr.mxu0 0.0
  %359 = vmatpush1.msra.mxu0 %v299
  %360 = vmatprep.subr.mxu0 0.0
  %361 = vmatpush1.msra.mxu0 %v300
  %362 = vmatprep.subr.mxu0 0.0
  %363 = vmatpush1.msra.mxu0 0.0
  %364 = vmatprep.subr.mxu0 0.0
  %365 = vmatpush1.msra.mxu0 0.0
  %366 = vmatprep.subr.mxu0 0.0
  %367 = vmatpush1.msra.mxu0 0.0
  %368 = vmatprep.subr.mxu0 0.0
  %369 = vmatpush1.msra.mxu0 0.0
  %370 = vmatprep.subr.mxu0 0.0
  %371 = vmatpush1.msra.mxu0 0.0
  %372 = vmatprep.subr.mxu0 0.0
  %373 = vmatpush1.msra.mxu0 0.0
  %374 = vmatprep.subr.mxu0 0.0
  %375 = vmatpush1.msra.mxu0 0.0
  %376 = vmatprep.subr.mxu0 0.0
  %377 = vmatpush1.msra.mxu0 0.0
  %378 = vmatprep.mubr.f32.mxu0 %v309
  %379 = vmatmul.mubr.f32.gmra.mrb[0].mxu0 %v275
  %v380 = vpop.f32.mrb[0].mxu0
  %v381 = vadd.f32 %v306, %v380
  %v382 = vpop.f32.mrb[0].mxu0
  %383 = vmatprep.mubr.f32.mxu0 %v312
  %384 = vmatmul.mubr.f32.gmra.mrb[0].mxu0 %v276
  %v385 = vpop.f32.mrb[0].mxu0
  %v386 = vadd.f32 %v306, %v385
  %v387 = vpop.f32.mrb[0].mxu0
  %388 = vdwg.mxu0
  %v389 = vmax.f32 %v381, 0.0
  %v390 = vmax.f32 %v386, 0.0
  %v391 = vrot.slane %v389, 6
  %v392 = vrot.slane %v390, 6
  %v393 = vsel %vm250, %v391, %v392
  %v394 = vsel %vm250, %v392, %v391
  %v395 = vmul.f32 %v244, %v394
  %v396 = vmul.f32 %v245, %v393
  %v397 = vrot.slane %v389, 7
  %v398 = vrot.slane %v390, 7
  %v399 = vsel %vm261, %v397, %v398
  %v400 = vsel %vm261, %v398, %v397
  %v401 = vmul.f32 %v257, %v400
  %v402 = vmul.f32 %v258, %v399
  %405 = vrot.lane.b32.xlu0 %v401, 64
  %v406 = vpop.permute.xlu0 %405
  %407 = vrot.lane.b32.xlu0 %v402, 64
  %v408 = vpop.permute.xlu0 %407
  %v411 = vsel %vm274, %v395, %v406
  %v412 = vsel %vm274, %v396, %v408
  %s413 = scalar_lea.vmem %s6, 192
  %v414 = vld [vmem:[%s413] sm:$0xff]
  %v415 = vld [vmem:[%s413 + $0x8] sm:$0xff]
  %v416 = vld [vmem:[%s413 + $0x10] sm:$0xff]
  %v417 = vld [vmem:[%s413 + $0x18] sm:$0xff]
  %v418 = vld [vmem:[%s413 + $0x20] sm:$0xff]
  %v419 = vld [vmem:[%s413 + $0x28] sm:$0xff]
  %v420 = vld [vmem:[%s413 + $0x30] sm:$0xff]
  %v421 = vld [vmem:[%s413 + $0x38] sm:$0xff]
  %v422 = vld [vmem:[%s413 + $0x40] sm:$0xff]
  %v423 = vld [vmem:[%s413 + $0x48] sm:$0xff]
  %v424 = vld [vmem:[%s413 + $0x50] sm:$0xff]
  %v425 = vld [vmem:[%s413 + $0x58] sm:$0xff]
  %v426 = vld [vmem:[%s413 + $0x60] sm:$0xff]
  %v427 = vld [vmem:[%s413 + $0x68] sm:$0xff]
  %v428 = vld [vmem:[%s413 + $0x70] sm:$0xff]
  %v429 = vld [vmem:[%s413 + $0x78] sm:$0xff]
  %v430 = vld [vmem:[%s413 + $0x80] sm:$0xff]
  %v431 = vld [vmem:[%s413 + $0x88] sm:$0xff]
  %v432 = vld [vmem:[%s413 + $0x90] sm:$0xff]
  %v433 = vld [vmem:[%s413 + $0x98] sm:$0xff]
  %v434 = vld [vmem:[%s413 + $0xa0] sm:$0xff]
  %v435 = vld [vmem:[%s413 + $0xa8] sm:$0xff]
  %v436 = vld [vmem:[%s413 + $0xb0] sm:$0xff]
  %v437 = vld [vmem:[%s413 + $0xb8] sm:$0xff]
  %s438 = scalar_lea.vmem %s7, 1
  %v439 = vld [vmem:[%s438] sm:$0x1]
  %v441 = vlaneseq
  %v442 = vshrl.u32 %v441, 7
  %v443 = vsub.s32 0, %v442
  %v444 = vrot.slane %v439, %v443
  %v447 = vsel %vm274, %v389, 0
  %v450 = vsel %vm274, %v390, 0
  %452 = vmatprep.subr.mxu0 0.0
  %453 = vmatpush1.msra.mxu0 %v414
  %454 = vmatprep.subr.mxu0 0.0
  %455 = vmatpush1.msra.mxu0 %v415
  %456 = vmatprep.subr.mxu0 0.0
  %457 = vmatpush1.msra.mxu0 %v416
  %458 = vmatprep.subr.mxu0 0.0
  %459 = vmatpush1.msra.mxu0 %v417
  %460 = vmatprep.subr.mxu0 0.0
  %461 = vmatpush1.msra.mxu0 %v418
  %462 = vmatprep.subr.mxu0 0.0
  %463 = vmatpush1.msra.mxu0 %v419
  %464 = vmatprep.subr.mxu0 0.0
  %465 = vmatpush1.msra.mxu0 %v420
  %466 = vmatprep.subr.mxu0 0.0
  %467 = vmatpush1.msra.mxu0 %v421
  %468 = vmatprep.subr.mxu0 0.0
  %469 = vmatpush1.msra.mxu0 %v422
  %470 = vmatprep.subr.mxu0 0.0
  %471 = vmatpush1.msra.mxu0 %v423
  %472 = vmatprep.subr.mxu0 0.0
  %473 = vmatpush1.msra.mxu0 %v424
  %474 = vmatprep.subr.mxu0 0.0
  %475 = vmatpush1.msra.mxu0 %v425
  %476 = vmatprep.subr.mxu0 0.0
  %477 = vmatpush1.msra.mxu0 %v426
  %478 = vmatprep.subr.mxu0 0.0
  %479 = vmatpush1.msra.mxu0 %v427
  %480 = vmatprep.subr.mxu0 0.0
  %481 = vmatpush1.msra.mxu0 %v428
  %482 = vmatprep.subr.mxu0 0.0
  %483 = vmatpush1.msra.mxu0 %v429
  %484 = vmatprep.subr.mxu0 0.0
  %485 = vmatpush1.msra.mxu0 %v430
  %486 = vmatprep.subr.mxu0 0.0
  %487 = vmatpush1.msra.mxu0 %v431
  %488 = vmatprep.subr.mxu0 0.0
  %489 = vmatpush1.msra.mxu0 %v432
  %490 = vmatprep.subr.mxu0 0.0
  %491 = vmatpush1.msra.mxu0 %v433
  %492 = vmatprep.subr.mxu0 0.0
  %493 = vmatpush1.msra.mxu0 %v434
  %494 = vmatprep.subr.mxu0 0.0
  %495 = vmatpush1.msra.mxu0 %v435
  %496 = vmatprep.subr.mxu0 0.0
  %497 = vmatpush1.msra.mxu0 %v436
  %498 = vmatprep.subr.mxu0 0.0
  %499 = vmatpush1.msra.mxu0 %v437
  %500 = vmatprep.subr.mxu0 0.0
  %501 = vmatpush1.msra.mxu0 0.0
  %502 = vmatprep.subr.mxu0 0.0
  %503 = vmatpush1.msra.mxu0 0.0
  %504 = vmatprep.subr.mxu0 0.0
  %505 = vmatpush1.msra.mxu0 0.0
  %506 = vmatprep.subr.mxu0 0.0
  %507 = vmatpush1.msra.mxu0 0.0
  %508 = vmatprep.subr.mxu0 0.0
  %509 = vmatpush1.msra.mxu0 0.0
  %510 = vmatprep.subr.mxu0 0.0
  %511 = vmatpush1.msra.mxu0 0.0
  %512 = vmatprep.subr.mxu0 0.0
  %513 = vmatpush1.msra.mxu0 0.0
  %514 = vmatprep.subr.mxu0 0.0
  %515 = vmatpush1.msra.mxu0 0.0
  %516 = vmatprep.mubr.f32.mxu0 %v447
  %517 = vmatmul.mubr.f32.gmra.mrb[0].mxu0 %v411
  %v518 = vpop.f32.mrb[0].mxu0
  %v519 = vadd.f32 %v444, %v518
  %v520 = vpop.f32.mrb[0].mxu0
  %521 = vmatprep.mubr.f32.mxu0 %v450
  %522 = vmatmul.mubr.f32.gmra.mrb[0].mxu0 %v412
  %v523 = vpop.f32.mrb[0].mxu0
  %v524 = vadd.f32 %v444, %v523
  %v525 = vpop.f32.mrb[0].mxu0
  %526 = vdwg.mxu0
  %v527 = vmax.f32 %v519, 0.0
  %v528 = vmax.f32 %v524, 0.0
  %v529 = vadd.f32 %v527, %v234
  %v530 = vadd.f32 %v528, %v239
  %v531 = vmax.f32 %v529, 0.0
  %v532 = vmax.f32 %v530, 0.0
  %vm533 = vcmp.ge.s32.totalorder %v49, 4
  %vm534 = vcmp.ge.s32.totalorder %v50, 4
  %v535 = vsel %vm533, 1.0, 0.0
  %v536 = vsel %vm534, 1.0, 0.0
  %v537 = vrot.slane %v531, 4
  %v538 = vrot.slane %v532, 4
  %vm539 = vcmp.lt.s32.totalorder %v249, 4
  %v540 = vsel %vm539, %v537, %v538
  %v541 = vsel %vm539, %v538, %v537
  %v542 = vmul.f32 %v535, %v541
  %v543 = vmul.f32 %v536, %v540
  %v544 = vrot.slane %v531, 6
  %v545 = vrot.slane %v532, 6
  %v546 = vsel %vm250, %v544, %v545
  %v547 = vsel %vm250, %v545, %v544
  %v548 = vmul.f32 %v244, %v547
  %v549 = vmul.f32 %v245, %v546
  %552 = vrot.lane.b32.xlu0 %v548, 64
  %v553 = vpop.permute.xlu0 %552
  %554 = vrot.lane.b32.xlu0 %v549, 64
  %v555 = vpop.permute.xlu0 %554
  %v558 = vsel %vm274, %v542, %v553
  %v559 = vsel %vm274, %v543, %v555
  %s560 = scalar_lea.vmem %s6, 384
  %v561 = vld [vmem:[%s560] sm:$0xff]
  %v562 = vld [vmem:[%s560 + $0x8] sm:$0xff]
  %v563 = vld [vmem:[%s560 + $0x10] sm:$0xff]
  %v564 = vld [vmem:[%s560 + $0x18] sm:$0xff]
  %v565 = vld [vmem:[%s560 + $0x20] sm:$0xff]
  %v566 = vld [vmem:[%s560 + $0x28] sm:$0xff]
  %v567 = vld [vmem:[%s560 + $0x30] sm:$0xff]
  %v568 = vld [vmem:[%s560 + $0x38] sm:$0xff]
  %v569 = vld [vmem:[%s560 + $0x40] sm:$0xff]
  %v570 = vld [vmem:[%s560 + $0x48] sm:$0xff]
  %v571 = vld [vmem:[%s560 + $0x50] sm:$0xff]
  %v572 = vld [vmem:[%s560 + $0x58] sm:$0xff]
  %v573 = vld [vmem:[%s560 + $0x60] sm:$0xff]
  %v574 = vld [vmem:[%s560 + $0x68] sm:$0xff]
  %v575 = vld [vmem:[%s560 + $0x70] sm:$0xff]
  %v576 = vld [vmem:[%s560 + $0x78] sm:$0xff]
  %v577 = vld [vmem:[%s560 + $0x80] sm:$0xff]
  %v578 = vld [vmem:[%s560 + $0x88] sm:$0xff]
  %v579 = vld [vmem:[%s560 + $0x90] sm:$0xff]
  %v580 = vld [vmem:[%s560 + $0x98] sm:$0xff]
  %v581 = vld [vmem:[%s560 + $0xa0] sm:$0xff]
  %v582 = vld [vmem:[%s560 + $0xa8] sm:$0xff]
  %v583 = vld [vmem:[%s560 + $0xb0] sm:$0xff]
  %v584 = vld [vmem:[%s560 + $0xb8] sm:$0xff]
  %s585 = scalar_lea.vmem %s7, 2
  %v586 = vld [vmem:[%s585] sm:$0x1]
  %v588 = vlaneseq
  %v589 = vshrl.u32 %v588, 7
  %v590 = vsub.s32 0, %v589
  %v591 = vrot.slane %v586, %v590
  %v594 = vsel %vm274, %v531, 0
  %v597 = vsel %vm274, %v532, 0
  %599 = vmatprep.subr.mxu0 0.0
  %600 = vmatpush1.msra.mxu0 %v561
  %601 = vmatprep.subr.mxu0 0.0
  %602 = vmatpush1.msra.mxu0 %v562
  %603 = vmatprep.subr.mxu0 0.0
  %604 = vmatpush1.msra.mxu0 %v563
  %605 = vmatprep.subr.mxu0 0.0
  %606 = vmatpush1.msra.mxu0 %v564
  %607 = vmatprep.subr.mxu0 0.0
  %608 = vmatpush1.msra.mxu0 %v565
  %609 = vmatprep.subr.mxu0 0.0
  %610 = vmatpush1.msra.mxu0 %v566
  %611 = vmatprep.subr.mxu0 0.0
  %612 = vmatpush1.msra.mxu0 %v567
  %613 = vmatprep.subr.mxu0 0.0
  %614 = vmatpush1.msra.mxu0 %v568
  %615 = vmatprep.subr.mxu0 0.0
  %616 = vmatpush1.msra.mxu0 %v569
  %617 = vmatprep.subr.mxu0 0.0
  %618 = vmatpush1.msra.mxu0 %v570
  %619 = vmatprep.subr.mxu0 0.0
  %620 = vmatpush1.msra.mxu0 %v571
  %621 = vmatprep.subr.mxu0 0.0
  %622 = vmatpush1.msra.mxu0 %v572
  %623 = vmatprep.subr.mxu0 0.0
  %624 = vmatpush1.msra.mxu0 %v573
  %625 = vmatprep.subr.mxu0 0.0
  %626 = vmatpush1.msra.mxu0 %v574
  %627 = vmatprep.subr.mxu0 0.0
  %628 = vmatpush1.msra.mxu0 %v575
  %629 = vmatprep.subr.mxu0 0.0
  %630 = vmatpush1.msra.mxu0 %v576
  %631 = vmatprep.subr.mxu0 0.0
  %632 = vmatpush1.msra.mxu0 %v577
  %633 = vmatprep.subr.mxu0 0.0
  %634 = vmatpush1.msra.mxu0 %v578
  %635 = vmatprep.subr.mxu0 0.0
  %636 = vmatpush1.msra.mxu0 %v579
  %637 = vmatprep.subr.mxu0 0.0
  %638 = vmatpush1.msra.mxu0 %v580
  %639 = vmatprep.subr.mxu0 0.0
  %640 = vmatpush1.msra.mxu0 %v581
  %641 = vmatprep.subr.mxu0 0.0
  %642 = vmatpush1.msra.mxu0 %v582
  %643 = vmatprep.subr.mxu0 0.0
  %644 = vmatpush1.msra.mxu0 %v583
  %645 = vmatprep.subr.mxu0 0.0
  %646 = vmatpush1.msra.mxu0 %v584
  %647 = vmatprep.subr.mxu0 0.0
  %648 = vmatpush1.msra.mxu0 0.0
  %649 = vmatprep.subr.mxu0 0.0
  %650 = vmatpush1.msra.mxu0 0.0
  %651 = vmatprep.subr.mxu0 0.0
  %652 = vmatpush1.msra.mxu0 0.0
  %653 = vmatprep.subr.mxu0 0.0
  %654 = vmatpush1.msra.mxu0 0.0
  %655 = vmatprep.subr.mxu0 0.0
  %656 = vmatpush1.msra.mxu0 0.0
  %657 = vmatprep.subr.mxu0 0.0
  %658 = vmatpush1.msra.mxu0 0.0
  %659 = vmatprep.subr.mxu0 0.0
  %660 = vmatpush1.msra.mxu0 0.0
  %661 = vmatprep.subr.mxu0 0.0
  %662 = vmatpush1.msra.mxu0 0.0
  %663 = vmatprep.mubr.f32.mxu0 %v594
  %664 = vmatmul.mubr.f32.gmra.mrb[0].mxu0 %v558
  %v665 = vpop.f32.mrb[0].mxu0
  %v666 = vadd.f32 %v591, %v665
  %v667 = vpop.f32.mrb[0].mxu0
  %668 = vmatprep.mubr.f32.mxu0 %v597
  %669 = vmatmul.mubr.f32.gmra.mrb[0].mxu0 %v559
  %v670 = vpop.f32.mrb[0].mxu0
  %v671 = vadd.f32 %v591, %v670
  %v672 = vpop.f32.mrb[0].mxu0
  %673 = vdwg.mxu0
  %v674 = vmax.f32 %v666, 0.0
  %v675 = vmax.f32 %v671, 0.0
  %v676 = vrot.slane %v674, 4
  %v677 = vrot.slane %v675, 4
  %v678 = vsel %vm539, %v676, %v677
  %v679 = vsel %vm539, %v677, %v676
  %v680 = vmul.f32 %v535, %v679
  %v681 = vmul.f32 %v536, %v678
  %v682 = vrot.slane %v674, 6
  %v683 = vrot.slane %v675, 6
  %v684 = vsel %vm250, %v682, %v683
  %v685 = vsel %vm250, %v683, %v682
  %v686 = vmul.f32 %v244, %v685
  %v687 = vmul.f32 %v245, %v684
  %690 = vrot.lane.b32.xlu0 %v686, 64
  %v691 = vpop.permute.xlu0 %690
  %692 = vrot.lane.b32.xlu0 %v687, 64
  %v693 = vpop.permute.xlu0 %692
  %v696 = vsel %vm274, %v680, %v691
  %v697 = vsel %vm274, %v681, %v693
  %s698 = scalar_lea.vmem %s6, 576
  %v699 = vld [vmem:[%s698] sm:$0xff]
  %v700 = vld [vmem:[%s698 + $0x8] sm:$0xff]
  %v701 = vld [vmem:[%s698 + $0x10] sm:$0xff]
  %v702 = vld [vmem:[%s698 + $0x18] sm:$0xff]
  %v703 = vld [vmem:[%s698 + $0x20] sm:$0xff]
  %v704 = vld [vmem:[%s698 + $0x28] sm:$0xff]
  %v705 = vld [vmem:[%s698 + $0x30] sm:$0xff]
  %v706 = vld [vmem:[%s698 + $0x38] sm:$0xff]
  %v707 = vld [vmem:[%s698 + $0x40] sm:$0xff]
  %v708 = vld [vmem:[%s698 + $0x48] sm:$0xff]
  %v709 = vld [vmem:[%s698 + $0x50] sm:$0xff]
  %v710 = vld [vmem:[%s698 + $0x58] sm:$0xff]
  %v711 = vld [vmem:[%s698 + $0x60] sm:$0xff]
  %v712 = vld [vmem:[%s698 + $0x68] sm:$0xff]
  %v713 = vld [vmem:[%s698 + $0x70] sm:$0xff]
  %v714 = vld [vmem:[%s698 + $0x78] sm:$0xff]
  %v715 = vld [vmem:[%s698 + $0x80] sm:$0xff]
  %v716 = vld [vmem:[%s698 + $0x88] sm:$0xff]
  %v717 = vld [vmem:[%s698 + $0x90] sm:$0xff]
  %v718 = vld [vmem:[%s698 + $0x98] sm:$0xff]
  %v719 = vld [vmem:[%s698 + $0xa0] sm:$0xff]
  %v720 = vld [vmem:[%s698 + $0xa8] sm:$0xff]
  %v721 = vld [vmem:[%s698 + $0xb0] sm:$0xff]
  %v722 = vld [vmem:[%s698 + $0xb8] sm:$0xff]
  %s723 = scalar_lea.vmem %s7, 3
  %v724 = vld [vmem:[%s723] sm:$0x1]
  %v726 = vlaneseq
  %v727 = vshrl.u32 %v726, 7
  %v728 = vsub.s32 0, %v727
  %v729 = vrot.slane %v724, %v728
  %v732 = vsel %vm274, %v674, 0
  %v735 = vsel %vm274, %v675, 0
  %737 = vmatprep.subr.mxu0 0.0
  %738 = vmatpush1.msra.mxu0 %v699
  %739 = vmatprep.subr.mxu0 0.0
  %740 = vmatpush1.msra.mxu0 %v700
  %741 = vmatprep.subr.mxu0 0.0
  %742 = vmatpush1.msra.mxu0 %v701
  %743 = vmatprep.subr.mxu0 0.0
  %744 = vmatpush1.msra.mxu0 %v702
  %745 = vmatprep.subr.mxu0 0.0
  %746 = vmatpush1.msra.mxu0 %v703
  %747 = vmatprep.subr.mxu0 0.0
  %748 = vmatpush1.msra.mxu0 %v704
  %749 = vmatprep.subr.mxu0 0.0
  %750 = vmatpush1.msra.mxu0 %v705
  %751 = vmatprep.subr.mxu0 0.0
  %752 = vmatpush1.msra.mxu0 %v706
  %753 = vmatprep.subr.mxu0 0.0
  %754 = vmatpush1.msra.mxu0 %v707
  %755 = vmatprep.subr.mxu0 0.0
  %756 = vmatpush1.msra.mxu0 %v708
  %757 = vmatprep.subr.mxu0 0.0
  %758 = vmatpush1.msra.mxu0 %v709
  %759 = vmatprep.subr.mxu0 0.0
  %760 = vmatpush1.msra.mxu0 %v710
  %761 = vmatprep.subr.mxu0 0.0
  %762 = vmatpush1.msra.mxu0 %v711
  %763 = vmatprep.subr.mxu0 0.0
  %764 = vmatpush1.msra.mxu0 %v712
  %765 = vmatprep.subr.mxu0 0.0
  %766 = vmatpush1.msra.mxu0 %v713
  %767 = vmatprep.subr.mxu0 0.0
  %768 = vmatpush1.msra.mxu0 %v714
  %769 = vmatprep.subr.mxu0 0.0
  %770 = vmatpush1.msra.mxu0 %v715
  %771 = vmatprep.subr.mxu0 0.0
  %772 = vmatpush1.msra.mxu0 %v716
  %773 = vmatprep.subr.mxu0 0.0
  %774 = vmatpush1.msra.mxu0 %v717
  %775 = vmatprep.subr.mxu0 0.0
  %776 = vmatpush1.msra.mxu0 %v718
  %777 = vmatprep.subr.mxu0 0.0
  %778 = vmatpush1.msra.mxu0 %v719
  %779 = vmatprep.subr.mxu0 0.0
  %780 = vmatpush1.msra.mxu0 %v720
  %781 = vmatprep.subr.mxu0 0.0
  %782 = vmatpush1.msra.mxu0 %v721
  %783 = vmatprep.subr.mxu0 0.0
  %784 = vmatpush1.msra.mxu0 %v722
  %785 = vmatprep.subr.mxu0 0.0
  %786 = vmatpush1.msra.mxu0 0.0
  %787 = vmatprep.subr.mxu0 0.0
  %788 = vmatpush1.msra.mxu0 0.0
  %789 = vmatprep.subr.mxu0 0.0
  %790 = vmatpush1.msra.mxu0 0.0
  %791 = vmatprep.subr.mxu0 0.0
  %792 = vmatpush1.msra.mxu0 0.0
  %793 = vmatprep.subr.mxu0 0.0
  %794 = vmatpush1.msra.mxu0 0.0
  %795 = vmatprep.subr.mxu0 0.0
  %796 = vmatpush1.msra.mxu0 0.0
  %797 = vmatprep.subr.mxu0 0.0
  %798 = vmatpush1.msra.mxu0 0.0
  %799 = vmatprep.subr.mxu0 0.0
  %800 = vmatpush1.msra.mxu0 0.0
  %801 = vmatprep.mubr.f32.mxu0 %v732
  %802 = vmatmul.mubr.f32.gmra.mrb[0].mxu0 %v696
  %v803 = vpop.f32.mrb[0].mxu0
  %v804 = vadd.f32 %v729, %v803
  %v805 = vpop.f32.mrb[0].mxu0
  %806 = vmatprep.mubr.f32.mxu0 %v735
  %807 = vmatmul.mubr.f32.gmra.mrb[0].mxu0 %v697
  %v808 = vpop.f32.mrb[0].mxu0
  %v809 = vadd.f32 %v729, %v808
  %v810 = vpop.f32.mrb[0].mxu0
  %811 = vdwg.mxu0
  %v812 = vmax.f32 %v804, 0.0
  %v813 = vmax.f32 %v809, 0.0
  %v814 = vadd.f32 %v812, %v531
  %v815 = vadd.f32 %v813, %v532
  %v816 = vmax.f32 %v814, 0.0
  %v817 = vmax.f32 %v815, 0.0
  %v818 = vrot.slane %v816, 4
  %v819 = vrot.slane %v817, 4
  %v820 = vsel %vm539, %v818, %v819
  %v821 = vsel %vm539, %v819, %v818
  %v822 = vmul.f32 %v535, %v821
  %v823 = vmul.f32 %v536, %v820
  %826 = vrot.lane.b32.xlu0 %v822, 64
  %v827 = vpop.permute.xlu0 %826
  %828 = vrot.lane.b32.xlu0 %v823, 64
  %v829 = vpop.permute.xlu0 %828
  %v832 = vsel %vm274, 0.0, %v827
  %v833 = vsel %vm274, 0.0, %v829
  %s834 = scalar_lea.vmem %s6, 768
  %v835 = vld [vmem:[%s834] sm:$0xff]
  %v836 = vld [vmem:[%s834 + $0x8] sm:$0xff]
  %v837 = vld [vmem:[%s834 + $0x10] sm:$0xff]
  %v838 = vld [vmem:[%s834 + $0x18] sm:$0xff]
  %v839 = vld [vmem:[%s834 + $0x20] sm:$0xff]
  %v840 = vld [vmem:[%s834 + $0x28] sm:$0xff]
  %v841 = vld [vmem:[%s834 + $0x30] sm:$0xff]
  %v842 = vld [vmem:[%s834 + $0x38] sm:$0xff]
  %v843 = vld [vmem:[%s834 + $0x40] sm:$0xff]
  %v844 = vld [vmem:[%s834 + $0x48] sm:$0xff]
  %v845 = vld [vmem:[%s834 + $0x50] sm:$0xff]
  %v846 = vld [vmem:[%s834 + $0x58] sm:$0xff]
  %v847 = vld [vmem:[%s834 + $0x60] sm:$0xff]
  %v848 = vld [vmem:[%s834 + $0x68] sm:$0xff]
  %v849 = vld [vmem:[%s834 + $0x70] sm:$0xff]
  %v850 = vld [vmem:[%s834 + $0x78] sm:$0xff]
  %v851 = vld [vmem:[%s834 + $0x80] sm:$0xff]
  %v852 = vld [vmem:[%s834 + $0x88] sm:$0xff]
  %v853 = vld [vmem:[%s834 + $0x90] sm:$0xff]
  %v854 = vld [vmem:[%s834 + $0x98] sm:$0xff]
  %v855 = vld [vmem:[%s834 + $0xa0] sm:$0xff]
  %v856 = vld [vmem:[%s834 + $0xa8] sm:$0xff]
  %v857 = vld [vmem:[%s834 + $0xb0] sm:$0xff]
  %v858 = vld [vmem:[%s834 + $0xb8] sm:$0xff]
  %s859 = scalar_lea.vmem %s7, 4
  %v860 = vld [vmem:[%s859] sm:$0x1]
  %v862 = vlaneseq
  %v863 = vshrl.u32 %v862, 7
  %v864 = vsub.s32 0, %v863
  %v865 = vrot.slane %v860, %v864
  %v868 = vsel %vm274, %v816, 0
  %v871 = vsel %vm274, %v817, 0
  %873 = vmatprep.subr.mxu0 0.0
  %874 = vmatpush1.msra.mxu0 %v835
  %875 = vmatprep.subr.mxu0 0.0
  %876 = vmatpush1.msra.mxu0 %v836
  %877 = vmatprep.subr.mxu0 0.0
  %878 = vmatpush1.msra.mxu0 %v837
  %879 = vmatprep.subr.mxu0 0.0
  %880 = vmatpush1.msra.mxu0 %v838
  %881 = vmatprep.subr.mxu0 0.0
  %882 = vmatpush1.msra.mxu0 %v839
  %883 = vmatprep.subr.mxu0 0.0
  %884 = vmatpush1.msra.mxu0 %v840
  %885 = vmatprep.subr.mxu0 0.0
  %886 = vmatpush1.msra.mxu0 %v841
  %887 = vmatprep.subr.mxu0 0.0
  %888 = vmatpush1.msra.mxu0 %v842
  %889 = vmatprep.subr.mxu0 0.0
  %890 = vmatpush1.msra.mxu0 %v843
  %891 = vmatprep.subr.mxu0 0.0
  %892 = vmatpush1.msra.mxu0 %v844
  %893 = vmatprep.subr.mxu0 0.0
  %894 = vmatpush1.msra.mxu0 %v845
  %895 = vmatprep.subr.mxu0 0.0
  %896 = vmatpush1.msra.mxu0 %v846
  %897 = vmatprep.subr.mxu0 0.0
  %898 = vmatpush1.msra.mxu0 %v847
  %899 = vmatprep.subr.mxu0 0.0
  %900 = vmatpush1.msra.mxu0 %v848
  %901 = vmatprep.subr.mxu0 0.0
  %902 = vmatpush1.msra.mxu0 %v849
  %903 = vmatprep.subr.mxu0 0.0
  %904 = vmatpush1.msra.mxu0 %v850
  %905 = vmatprep.subr.mxu0 0.0
  %906 = vmatpush1.msra.mxu0 %v851
  %907 = vmatprep.subr.mxu0 0.0
  %908 = vmatpush1.msra.mxu0 %v852
  %909 = vmatprep.subr.mxu0 0.0
  %910 = vmatpush1.msra.mxu0 %v853
  %911 = vmatprep.subr.mxu0 0.0
  %912 = vmatpush1.msra.mxu0 %v854
  %913 = vmatprep.subr.mxu0 0.0
  %914 = vmatpush1.msra.mxu0 %v855
  %915 = vmatprep.subr.mxu0 0.0
  %916 = vmatpush1.msra.mxu0 %v856
  %917 = vmatprep.subr.mxu0 0.0
  %918 = vmatpush1.msra.mxu0 %v857
  %919 = vmatprep.subr.mxu0 0.0
  %920 = vmatpush1.msra.mxu0 %v858
  %921 = vmatprep.subr.mxu0 0.0
  %922 = vmatpush1.msra.mxu0 0.0
  %923 = vmatprep.subr.mxu0 0.0
  %924 = vmatpush1.msra.mxu0 0.0
  %925 = vmatprep.subr.mxu0 0.0
  %926 = vmatpush1.msra.mxu0 0.0
  %927 = vmatprep.subr.mxu0 0.0
  %928 = vmatpush1.msra.mxu0 0.0
  %929 = vmatprep.subr.mxu0 0.0
  %930 = vmatpush1.msra.mxu0 0.0
  %931 = vmatprep.subr.mxu0 0.0
  %932 = vmatpush1.msra.mxu0 0.0
  %933 = vmatprep.subr.mxu0 0.0
  %934 = vmatpush1.msra.mxu0 0.0
  %935 = vmatprep.subr.mxu0 0.0
  %936 = vmatpush1.msra.mxu0 0.0
  %937 = vmatprep.mubr.f32.mxu0 %v868
  %938 = vmatmul.mubr.f32.gmra.mrb[0].mxu0 %v832
  %v939 = vpop.f32.mrb[0].mxu0
  %v940 = vadd.f32 %v865, %v939
  %v941 = vpop.f32.mrb[0].mxu0
  %942 = vmatprep.mubr.f32.mxu0 %v871
  %943 = vmatmul.mubr.f32.gmra.mrb[0].mxu0 %v833
  %v944 = vpop.f32.mrb[0].mxu0
  %v945 = vadd.f32 %v865, %v944
  %v946 = vpop.f32.mrb[0].mxu0
  %947 = vdwg.mxu0
  %v948 = vmax.f32 %v940, 0.0
  %v949 = vmax.f32 %v945, 0.0
  %v950 = vrot.slane %v948, 4
  %v951 = vrot.slane %v949, 4
  %v952 = vsel %vm539, %v950, %v951
  %v953 = vsel %vm539, %v951, %v950
  %v954 = vmul.f32 %v535, %v953
  %v955 = vmul.f32 %v536, %v952
  %958 = vrot.lane.b32.xlu0 %v954, 64
  %v959 = vpop.permute.xlu0 %958
  %960 = vrot.lane.b32.xlu0 %v955, 64
  %v961 = vpop.permute.xlu0 %960
  %v964 = vsel %vm274, 0.0, %v959
  %v965 = vsel %vm274, 0.0, %v961
  %s966 = scalar_lea.vmem %s6, 960
  %v967 = vld [vmem:[%s966] sm:$0xff]
  %v968 = vld [vmem:[%s966 + $0x8] sm:$0xff]
  %v969 = vld [vmem:[%s966 + $0x10] sm:$0xff]
  %v970 = vld [vmem:[%s966 + $0x18] sm:$0xff]
  %v971 = vld [vmem:[%s966 + $0x20] sm:$0xff]
  %v972 = vld [vmem:[%s966 + $0x28] sm:$0xff]
  %v973 = vld [vmem:[%s966 + $0x30] sm:$0xff]
  %v974 = vld [vmem:[%s966 + $0x38] sm:$0xff]
  %v975 = vld [vmem:[%s966 + $0x40] sm:$0xff]
  %v976 = vld [vmem:[%s966 + $0x48] sm:$0xff]
  %v977 = vld [vmem:[%s966 + $0x50] sm:$0xff]
  %v978 = vld [vmem:[%s966 + $0x58] sm:$0xff]
  %v979 = vld [vmem:[%s966 + $0x60] sm:$0xff]
  %v980 = vld [vmem:[%s966 + $0x68] sm:$0xff]
  %v981 = vld [vmem:[%s966 + $0x70] sm:$0xff]
  %v982 = vld [vmem:[%s966 + $0x78] sm:$0xff]
  %v983 = vld [vmem:[%s966 + $0x80] sm:$0xff]
  %v984 = vld [vmem:[%s966 + $0x88] sm:$0xff]
  %v985 = vld [vmem:[%s966 + $0x90] sm:$0xff]
  %v986 = vld [vmem:[%s966 + $0x98] sm:$0xff]
  %v987 = vld [vmem:[%s966 + $0xa0] sm:$0xff]
  %v988 = vld [vmem:[%s966 + $0xa8] sm:$0xff]
  %v989 = vld [vmem:[%s966 + $0xb0] sm:$0xff]
  %v990 = vld [vmem:[%s966 + $0xb8] sm:$0xff]
  %s991 = scalar_lea.vmem %s7, 5
  %v992 = vld [vmem:[%s991] sm:$0x1]
  %v994 = vlaneseq
  %v995 = vshrl.u32 %v994, 7
  %v996 = vsub.s32 0, %v995
  %v997 = vrot.slane %v992, %v996
  %v1000 = vsel %vm274, %v948, 0
  %v1003 = vsel %vm274, %v949, 0
  %1005 = vmatprep.subr.mxu0 0.0
  %1006 = vmatpush1.msra.mxu0 %v967
  %1007 = vmatprep.subr.mxu0 0.0
  %1008 = vmatpush1.msra.mxu0 %v968
  %1009 = vmatprep.subr.mxu0 0.0
  %1010 = vmatpush1.msra.mxu0 %v969
  %1011 = vmatprep.subr.mxu0 0.0
  %1012 = vmatpush1.msra.mxu0 %v970
  %1013 = vmatprep.subr.mxu0 0.0
  %1014 = vmatpush1.msra.mxu0 %v971
  %1015 = vmatprep.subr.mxu0 0.0
  %1016 = vmatpush1.msra.mxu0 %v972
  %1017 = vmatprep.subr.mxu0 0.0
  %1018 = vmatpush1.msra.mxu0 %v973
  %1019 = vmatprep.subr.mxu0 0.0
  %1020 = vmatpush1.msra.mxu0 %v974
  %1021 = vmatprep.subr.mxu0 0.0
  %1022 = vmatpush1.msra.mxu0 %v975
  %1023 = vmatprep.subr.mxu0 0.0
  %1024 = vmatpush1.msra.mxu0 %v976
  %1025 = vmatprep.subr.mxu0 0.0
  %1026 = vmatpush1.msra.mxu0 %v977
  %1027 = vmatprep.subr.mxu0 0.0
  %1028 = vmatpush1.msra.mxu0 %v978
  %1029 = vmatprep.subr.mxu0 0.0
  %1030 = vmatpush1.msra.mxu0 %v979
  %1031 = vmatprep.subr.mxu0 0.0
  %1032 = vmatpush1.msra.mxu0 %v980
  %1033 = vmatprep.subr.mxu0 0.0
  %1034 = vmatpush1.msra.mxu0 %v981
  %1035 = vmatprep.subr.mxu0 0.0
  %1036 = vmatpush1.msra.mxu0 %v982
  %1037 = vmatprep.subr.mxu0 0.0
  %1038 = vmatpush1.msra.mxu0 %v983
  %1039 = vmatprep.subr.mxu0 0.0
  %1040 = vmatpush1.msra.mxu0 %v984
  %1041 = vmatprep.subr.mxu0 0.0
  %1042 = vmatpush1.msra.mxu0 %v985
  %1043 = vmatprep.subr.mxu0 0.0
  %1044 = vmatpush1.msra.mxu0 %v986
  %1045 = vmatprep.subr.mxu0 0.0
  %1046 = vmatpush1.msra.mxu0 %v987
  %1047 = vmatprep.subr.mxu0 0.0
  %1048 = vmatpush1.msra.mxu0 %v988
  %1049 = vmatprep.subr.mxu0 0.0
  %1050 = vmatpush1.msra.mxu0 %v989
  %1051 = vmatprep.subr.mxu0 0.0
  %1052 = vmatpush1.msra.mxu0 %v990
  %1053 = vmatprep.subr.mxu0 0.0
  %1054 = vmatpush1.msra.mxu0 0.0
  %1055 = vmatprep.subr.mxu0 0.0
  %1056 = vmatpush1.msra.mxu0 0.0
  %1057 = vmatprep.subr.mxu0 0.0
  %1058 = vmatpush1.msra.mxu0 0.0
  %1059 = vmatprep.subr.mxu0 0.0
  %1060 = vmatpush1.msra.mxu0 0.0
  %1061 = vmatprep.subr.mxu0 0.0
  %1062 = vmatpush1.msra.mxu0 0.0
  %1063 = vmatprep.subr.mxu0 0.0
  %1064 = vmatpush1.msra.mxu0 0.0
  %1065 = vmatprep.subr.mxu0 0.0
  %1066 = vmatpush1.msra.mxu0 0.0
  %1067 = vmatprep.subr.mxu0 0.0
  %1068 = vmatpush1.msra.mxu0 0.0
  %1069 = vmatprep.mubr.f32.mxu0 %v1000
  %1070 = vmatmul.mubr.f32.gmra.mrb[0].mxu0 %v964
  %v1071 = vpop.f32.mrb[0].mxu0
  %v1072 = vadd.f32 %v997, %v1071
  %v1073 = vpop.f32.mrb[0].mxu0
  %1074 = vmatprep.mubr.f32.mxu0 %v1003
  %1075 = vmatmul.mubr.f32.gmra.mrb[0].mxu0 %v965
  %v1076 = vpop.f32.mrb[0].mxu0
  %v1077 = vadd.f32 %v997, %v1076
  %v1078 = vpop.f32.mrb[0].mxu0
  %1079 = vdwg.mxu0
  %v1080 = vmax.f32 %v1072, 0.0
  %v1081 = vmax.f32 %v1077, 0.0
  %v1082 = vadd.f32 %v1080, %v816
  %v1083 = vadd.f32 %v1081, %v817
  %v1084 = vmax.f32 %v1082, 0.0
  %v1085 = vmax.f32 %v1083, 0.0
  %v1086 = vld [vmem:[%s2] sm:$0x3]
  %vm1087 = vcmask 130048
  %v1089 = vsel %vm1087, %v1086, 0
  %1091 = vmatprep.subr.mxu0 0.0
  %1092 = vmatpush1.msra.mxu0 %v1084
  %1093 = vmatprep.subr.mxu0 0.0
  %1094 = vmatpush1.msra.mxu0 %v1085
  %1095 = vmatprep.subr.mxu0 0.0
  %1096 = vmatpush1.msra.mxu0 0.0
  %1097 = vmatprep.subr.mxu0 0.0
  %1098 = vmatpush1.msra.mxu0 0.0
  %1099 = vmatprep.subr.mxu0 0.0
  %1100 = vmatpush1.msra.mxu0 0.0
  %1101 = vmatprep.subr.mxu0 0.0
  %1102 = vmatpush1.msra.mxu0 0.0
  %1103 = vmatprep.subr.mxu0 0.0
  %1104 = vmatpush1.msra.mxu0 0.0
  %1105 = vmatprep.subr.mxu0 0.0
  %1106 = vmatpush1.msra.mxu0 0.0
  %1107 = vmatprep.subr.mxu0 0.0
  %1108 = vmatpush1.msra.mxu0 0.0
  %1109 = vmatprep.subr.mxu0 0.0
  %1110 = vmatpush1.msra.mxu0 0.0
  %1111 = vmatprep.subr.mxu0 0.0
  %1112 = vmatpush1.msra.mxu0 0.0
  %1113 = vmatprep.subr.mxu0 0.0
  %1114 = vmatpush1.msra.mxu0 0.0
  %1115 = vmatprep.subr.mxu0 0.0
  %1116 = vmatpush1.msra.mxu0 0.0
  %1117 = vmatprep.subr.mxu0 0.0
  %1118 = vmatpush1.msra.mxu0 0.0
  %1119 = vmatprep.subr.mxu0 0.0
  %1120 = vmatpush1.msra.mxu0 0.0
  %1121 = vmatprep.subr.mxu0 0.0
  %1122 = vmatpush1.msra.mxu0 0.0
  %1123 = vmatprep.subr.mxu0 0.0
  %1124 = vmatpush1.msra.mxu0 0.0
  %1125 = vmatprep.subr.mxu0 0.0
  %1126 = vmatpush1.msra.mxu0 0.0
  %1127 = vmatprep.subr.mxu0 0.0
  %1128 = vmatpush1.msra.mxu0 0.0
  %1129 = vmatprep.subr.mxu0 0.0
  %1130 = vmatpush1.msra.mxu0 0.0
  %1131 = vmatprep.subr.mxu0 0.0
  %1132 = vmatpush1.msra.mxu0 0.0
  %1133 = vmatprep.subr.mxu0 0.0
  %1134 = vmatpush1.msra.mxu0 0.0
  %1135 = vmatprep.subr.mxu0 0.0
  %1136 = vmatpush1.msra.mxu0 0.0
  %1137 = vmatprep.subr.mxu0 0.0
  %1138 = vmatpush1.msra.mxu0 0.0
  %1139 = vmatprep.subr.mxu0 0.0
  %1140 = vmatpush1.msra.mxu0 0.0
  %1141 = vmatprep.subr.mxu0 0.0
  %1142 = vmatpush1.msra.mxu0 0.0
  %1143 = vmatprep.subr.mxu0 0.0
  %1144 = vmatpush1.msra.mxu0 0.0
  %1145 = vmatprep.subr.mxu0 0.0
  %1146 = vmatpush1.msra.mxu0 0.0
  %1147 = vmatprep.subr.mxu0 0.0
  %1148 = vmatpush1.msra.mxu0 0.0
  %1149 = vmatprep.subr.mxu0 0.0
  %1150 = vmatpush1.msra.mxu0 0.0
  %1151 = vmatprep.subr.mxu0 0.0
  %1152 = vmatpush1.msra.mxu0 0.0
  %1153 = vmatprep.subr.mxu0 0.0
  %1154 = vmatpush1.msra.mxu0 0.0
  %1155 = vmatprep.mubr.f32.mxu0 0.0
  %1156 = vmatmul.mubr.f32.gmra.mrb[0].mxu0 %v1089
  %v1157 = vpop.f32.mrb[0].mxu0
  %v1158 = vadd.f32 0.0, %v1157
  %v1159 = vpop.f32.mrb[0].mxu0
  %1160 = vdwg.mxu0
  %v1161 = vld [vmem:[%s8] sm:$0xff]
  %v1162 = vld [vmem:[%s8 + $0x8] sm:$0xff]
  %v1163 = vld [vmem:[%s8 + $0x10] sm:$0xff]
  %v1164 = vld [vmem:[%s8 + $0x18] sm:$0xff]
  %v1165 = vld [vmem:[%s8 + $0x20] sm:$0xff]
  %v1166 = vld [vmem:[%s8 + $0x28] sm:$0xff]
  %v1167 = vld [vmem:[%s8 + $0x30] sm:$0xff]
  %v1168 = vld [vmem:[%s8 + $0x38] sm:$0xff]
  %v1169 = vld [vmem:[%s9] sm:$0x1]
  %v1171 = vlaneseq
  %v1172 = vshrl.u32 %v1171, 7
  %v1173 = vsub.s32 0, %v1172
  %v1174 = vrot.slane %v1169, %v1173
  %v1177 = vsel %vm274, %v1158, 0
  %1179 = vmatprep.subr.mxu0 0.0
  %1180 = vmatpush1.msra.mxu0 %v1161
  %1181 = vmatprep.subr.mxu0 0.0
  %1182 = vmatpush1.msra.mxu0 %v1162
  %1183 = vmatprep.subr.mxu0 0.0
  %1184 = vmatpush1.msra.mxu0 %v1163
  %1185 = vmatprep.subr.mxu0 0.0
  %1186 = vmatpush1.msra.mxu0 %v1164
  %1187 = vmatprep.subr.mxu0 0.0
  %1188 = vmatpush1.msra.mxu0 %v1165
  %1189 = vmatprep.subr.mxu0 0.0
  %1190 = vmatpush1.msra.mxu0 %v1166
  %1191 = vmatprep.subr.mxu0 0.0
  %1192 = vmatpush1.msra.mxu0 %v1167
  %1193 = vmatprep.subr.mxu0 0.0
  %1194 = vmatpush1.msra.mxu0 %v1168
  %1195 = vmatprep.subr.mxu0 0.0
  %1196 = vmatpush1.msra.mxu0 0.0
  %1197 = vmatprep.subr.mxu0 0.0
  %1198 = vmatpush1.msra.mxu0 0.0
  %1199 = vmatprep.subr.mxu0 0.0
  %1200 = vmatpush1.msra.mxu0 0.0
  %1201 = vmatprep.subr.mxu0 0.0
  %1202 = vmatpush1.msra.mxu0 0.0
  %1203 = vmatprep.subr.mxu0 0.0
  %1204 = vmatpush1.msra.mxu0 0.0
  %1205 = vmatprep.subr.mxu0 0.0
  %1206 = vmatpush1.msra.mxu0 0.0
  %1207 = vmatprep.subr.mxu0 0.0
  %1208 = vmatpush1.msra.mxu0 0.0
  %1209 = vmatprep.subr.mxu0 0.0
  %1210 = vmatpush1.msra.mxu0 0.0
  %1211 = vmatprep.subr.mxu0 0.0
  %1212 = vmatpush1.msra.mxu0 0.0
  %1213 = vmatprep.subr.mxu0 0.0
  %1214 = vmatpush1.msra.mxu0 0.0
  %1215 = vmatprep.subr.mxu0 0.0
  %1216 = vmatpush1.msra.mxu0 0.0
  %1217 = vmatprep.subr.mxu0 0.0
  %1218 = vmatpush1.msra.mxu0 0.0
  %1219 = vmatprep.subr.mxu0 0.0
  %1220 = vmatpush1.msra.mxu0 0.0
  %1221 = vmatprep.subr.mxu0 0.0
  %1222 = vmatpush1.msra.mxu0 0.0
  %1223 = vmatprep.subr.mxu0 0.0
  %1224 = vmatpush1.msra.mxu0 0.0
  %1225 = vmatprep.subr.mxu0 0.0
  %1226 = vmatpush1.msra.mxu0 0.0
  %1227 = vmatprep.subr.mxu0 0.0
  %1228 = vmatpush1.msra.mxu0 0.0
  %1229 = vmatprep.subr.mxu0 0.0
  %1230 = vmatpush1.msra.mxu0 0.0
  %1231 = vmatprep.subr.mxu0 0.0
  %1232 = vmatpush1.msra.mxu0 0.0
  %1233 = vmatprep.subr.mxu0 0.0
  %1234 = vmatpush1.msra.mxu0 0.0
  %1235 = vmatprep.subr.mxu0 0.0
  %1236 = vmatpush1.msra.mxu0 0.0
  %1237 = vmatprep.subr.mxu0 0.0
  %1238 = vmatpush1.msra.mxu0 0.0
  %1239 = vmatprep.subr.mxu0 0.0
  %1240 = vmatpush1.msra.mxu0 0.0
  %1241 = vmatprep.subr.mxu0 0.0
  %1242 = vmatpush1.msra.mxu0 0.0
  %1243 = vmatprep.mubr.f32.mxu0 0.0
  %1244 = vmatmul.mubr.f32.gmra.mrb[0].mxu0 %v1177
  %v1245 = vpop.f32.mrb[0].mxu0
  %v1246 = vadd.f32 %v1174, %v1245
  %v1247 = vpop.f32.mrb[0].mxu0
  %1248 = vdwg.mxu0
  %v1249 = vxor.u32 %v1246, 2147483648
  %v1250 = vmul.f32 %v1249, 1.442695
  %v1251 = vpow.pop %v1250
  %v1252 = vadd.f32 %v1251, 1.0
  %v1253 = vrcp.pop %v1252
  %v1254 = vmul.f32 1.0, %v1253
  %1255 = vrot.lane.b32.xlu0 %v1158, 96
  %v1256 = vpop.permute.xlu0 %1255
  %v1258 = vsub.f32 %v1158, %v1256
  %v1259 = vmul.f32 %v1254, %v1258
  %1261 = vrot.lane.b32.xlu0 %v1259, 32
  %v1262 = vpop.permute.xlu0 %1261
  %v1264 = vadd.f32 %v1158, %v1262
  %v1265 = vld [vmem:[%s10] sm:$0xff]
  %v1266 = vld [vmem:[%s10 + $0x8] sm:$0xff]
  %v1267 = vld [vmem:[%s10 + $0x10] sm:$0xff]
  %v1268 = vld [vmem:[%s10 + $0x18] sm:$0xff]
  %v1269 = vld [vmem:[%s11] sm:$0x1]
  %v1271 = vlaneseq
  %v1272 = vshrl.u32 %v1271, 7
  %v1273 = vsub.s32 0, %v1272
  %v1274 = vrot.slane %v1269, %v1273
  %1277 = vrot.lane.b32.xlu0 %v1264, 96
  %v1278 = vpop.permute.xlu0 %1277
  %v1279 = vsel %vm57, %v1278, 0
  %1281 = vmatprep.subr.mxu0 0.0
  %1282 = vmatpush1.msra.mxu0 %v1265
  %1283 = vmatprep.subr.mxu0 0.0
  %1284 = vmatpush1.msra.mxu0 %v1266
  %1285 = vmatprep.subr.mxu0 0.0
  %1286 = vmatpush1.msra.mxu0 %v1267
  %1287 = vmatprep.subr.mxu0 0.0
  %1288 = vmatpush1.msra.mxu0 %v1268
  %1289 = vmatprep.subr.mxu0 0.0
  %1290 = vmatpush1.msra.mxu0 0.0
  %1291 = vmatprep.subr.mxu0 0.0
  %1292 = vmatpush1.msra.mxu0 0.0
  %1293 = vmatprep.subr.mxu0 0.0
  %1294 = vmatpush1.msra.mxu0 0.0
  %1295 = vmatprep.subr.mxu0 0.0
  %1296 = vmatpush1.msra.mxu0 0.0
  %1297 = vmatprep.subr.mxu0 0.0
  %1298 = vmatpush1.msra.mxu0 0.0
  %1299 = vmatprep.subr.mxu0 0.0
  %1300 = vmatpush1.msra.mxu0 0.0
  %1301 = vmatprep.subr.mxu0 0.0
  %1302 = vmatpush1.msra.mxu0 0.0
  %1303 = vmatprep.subr.mxu0 0.0
  %1304 = vmatpush1.msra.mxu0 0.0
  %1305 = vmatprep.subr.mxu0 0.0
  %1306 = vmatpush1.msra.mxu0 0.0
  %1307 = vmatprep.subr.mxu0 0.0
  %1308 = vmatpush1.msra.mxu0 0.0
  %1309 = vmatprep.subr.mxu0 0.0
  %1310 = vmatpush1.msra.mxu0 0.0
  %1311 = vmatprep.subr.mxu0 0.0
  %1312 = vmatpush1.msra.mxu0 0.0
  %1313 = vmatprep.subr.mxu0 0.0
  %1314 = vmatpush1.msra.mxu0 0.0
  %1315 = vmatprep.subr.mxu0 0.0
  %1316 = vmatpush1.msra.mxu0 0.0
  %1317 = vmatprep.subr.mxu0 0.0
  %1318 = vmatpush1.msra.mxu0 0.0
  %1319 = vmatprep.subr.mxu0 0.0
  %1320 = vmatpush1.msra.mxu0 0.0
  %1321 = vmatprep.subr.mxu0 0.0
  %1322 = vmatpush1.msra.mxu0 0.0
  %1323 = vmatprep.subr.mxu0 0.0
  %1324 = vmatpush1.msra.mxu0 0.0
  %1325 = vmatprep.subr.mxu0 0.0
  %1326 = vmatpush1.msra.mxu0 0.0
  %1327 = vmatprep.subr.mxu0 0.0
  %1328 = vmatpush1.msra.mxu0 0.0
  %1329 = vmatprep.subr.mxu0 0.0
  %1330 = vmatpush1.msra.mxu0 0.0
  %1331 = vmatprep.subr.mxu0 0.0
  %1332 = vmatpush1.msra.mxu0 0.0
  %1333 = vmatprep.subr.mxu0 0.0
  %1334 = vmatpush1.msra.mxu0 0.0
  %1335 = vmatprep.subr.mxu0 0.0
  %1336 = vmatpush1.msra.mxu0 0.0
  %1337 = vmatprep.subr.mxu0 0.0
  %1338 = vmatpush1.msra.mxu0 0.0
  %1339 = vmatprep.subr.mxu0 0.0
  %1340 = vmatpush1.msra.mxu0 0.0
  %1341 = vmatprep.subr.mxu0 0.0
  %1342 = vmatpush1.msra.mxu0 0.0
  %1343 = vmatprep.subr.mxu0 0.0
  %1344 = vmatpush1.msra.mxu0 0.0
  %1345 = vmatprep.mubr.f32.mxu0 0.0
  %1346 = vmatmul.mubr.f32.gmra.mrb[0].mxu0 %v1279
  %v1347 = vpop.f32.mrb[0].mxu0
  %v1348 = vadd.f32 %v1274, %v1347
  %v1349 = vpop.f32.mrb[0].mxu0
  %1350 = vdwg.mxu0
  %v1351 = vmax.f32 %v1348, 0.0
  %v1352 = vld [vmem:[%s12] sm:$0x1]
  %v1354 = vlaneseq
  %v1355 = vshrl.u32 %v1354, 7
  %v1356 = vsub.s32 0, %v1355
  %v1357 = vrot.slane %v1352, %v1356
  %v1359 = vmul.f32 %v1351, %v1357
  %vm1360 = vcmask 254976
  %v1361 = vsel %vm1360, %v1359, 0.0
  %1362 = vadd.xlane.f32.xlu0 %v1361
  %v1363 = vpop.xlane.xlu0 %1362
  %v1364 = vld [vmem:[#allocation2] sm:$0x1]
  %v1366 = vlaneseq
  %v1367 = vshrl.u32 %v1366, 7
  %v1368 = vsub.s32 0, %v1367
  %v1369 = vrot.slane %v1364, %v1368
  %v1371 = vadd.f32 %v1363, %v1369
  %vm1372 = vcmask 1024
  %1373 = vst.msk [vmem:[%s14] sm:$0x3] %vm1372, %v1371
  // Predicated region
  $region58: #{t2snt_forward.1} parent=0 // pred_check
    _
  $region59: #{t2snt_forward.1} parent=0 // pred_check_branch
    %1375 = sbr.rel (0) target = $region61
  $region60: #{t2snt_forward.1} parent=0 // pred_region
    _
  $region61: #{t2snt_forward.1} parent=0 // pred_fallthru
    _
  // Predicated region
  $region62: #{t2snt_forward.1} parent=0 // pred_check
    _
  $region63: #{t2snt_forward.1} parent=0 // pred_check_branch
    %1377 = sbr.rel (0) target = $region65
  $region64: #{t2snt_forward.1} parent=0 // pred_region
    _
  $region65: #{t2snt_forward.1} parent=0 // pred_fallthru
    _

</llo_original>
